<compile_context>
chip_gen: v6e
topology: v6e:2x2x1
jax: 0.10.0
libtpu: 0.0.40
codegen_flags: <defaults>
</compile_context>

<pallas_src>
import functools

import jax
import jax.numpy as jnp
from jax.experimental import pallas as pl
from jax.experimental.pallas import tpu as pltpu

NUM_INPUTS = 768
H1 = 512
H2 = 512
H3 = 256

_MIN_TC_SPLIT = 128  # only bother splitting for 2 TensorCores if >= 2*this rows


def _round_up(v, m):
    return ((v + m - 1) // m) * m


def _cdiv(a, b):
    return (a + b - 1) // b


def _choose_block_b(B, block_b):
    """Pick the effective batch tile.

    - Never bigger than round_up(B, 8): tiny batches run with tiny tiles
      instead of padding up to block_b rows of dead compute.
    - If there is enough work (B >= 2*_MIN_TC_SPLIT) but only one grid step
      would form, halve the tile so the 'parallel' axis has >= 2 steps and can
      shard across the two TensorCores on v7x.
    """
    blk = min(block_b, _round_up(B, 8))
    blk = max(blk, 8)
    if B >= 2 * _MIN_TC_SPLIT and _cdiv(B, blk) < 2:
        blk = _round_up(_cdiv(B, 2), 8)
    return blk


def _mlp_kernel(x_ref, w1_ref, b1_ref, w2_ref, b2_ref, w3_ref, b3_ref, o_ref):
    # Cast the f32 input tile to bf16 in-kernel (VPU, hidden under MXU work);
    # weights arrive already in bf16. Accumulation / bias / ReLU stay in f32.
    x = x_ref[...].astype(jnp.bfloat16)
    # Layer 1: Linear + (Dropout=identity) + ReLU
    h = jnp.dot(x, w1_ref[...], preferred_element_type=jnp.float32)
    h = jnp.maximum(h + b1_ref[...], 0.0)
    # Layer 2
    h = jnp.dot(h.astype(jnp.bfloat16), w2_ref[...],
                preferred_element_type=jnp.float32)
    h = jnp.maximum(h + b2_ref[...], 0.0)
    # Layer 3
    h = jnp.dot(h.astype(jnp.bfloat16), w3_ref[...],
                preferred_element_type=jnp.float32)
    o_ref[...] = jnp.maximum(h + b3_ref[...], 0.0).astype(o_ref.dtype)
    # TODO(synk): training-mode Dropout (random masking) not implemented; eval semantics used.


@functools.partial(jax.jit, static_argnames=("block_b", "out_dtype"))
def discourse_base_forward(x, w1, b1, w2, b2, w3, b3, *, block_b=2048,
                           out_dtype=jnp.float32):
    """x: (B, NUM_INPUTS) float. Returns (B, 256) in out_dtype (default f32).

    block_b is the maximum batch tile (multiple of 8). The actual tile is
    clamped for small batches and split to guarantee >= 2 grid steps on large
    batches (v7x megacore). Batch is zero-padded to a multiple of the tile and
    the padding sliced off afterwards.
    """
    B, F = x.shape
    assert F == NUM_INPUTS
    assert block_b % 8 == 0 and block_b >= 8

    blk = _choose_block_b(B, block_b)
    Bp = _round_up(B, blk)
    pad_b = Bp - B

    # x stays f32 (cast to bf16 inside the kernel); weights go bf16 for the MXU.
    xf = x.astype(jnp.float32)
    if pad_b:
        xf = jnp.pad(xf, ((0, pad_b), (0, 0)))
    w1b = w1.astype(jnp.bfloat16)
    w2b = w2.astype(jnp.bfloat16)
    w3b = w3.astype(jnp.bfloat16)
    b1f = b1.reshape(1, H1).astype(jnp.float32)
    b2f = b2.reshape(1, H2).astype(jnp.float32)
    b3f = b3.reshape(1, H3).astype(jnp.float32)

    grid = (Bp // blk,)

    # Weights/biases are constant-index (fetched once, stay resident) and
    # single-buffered; only the batch dim of x / out is tiled & double-buffered.
    def _resident(shape):
        return pl.BlockSpec(shape, lambda i: (0, 0), pipeline_mode=pl.Buffered(1))

    in_specs = [
        pl.BlockSpec((blk, NUM_INPUTS), lambda i: (i, 0)),  # x tile (f32)
        _resident((NUM_INPUTS, H1)),                        # w1 (bf16)
        _resident((1, H1)),                                 # b1 (f32)
        _resident((H1, H2)),                                # w2 (bf16)
        _resident((1, H2)),                                 # b2 (f32)
        _resident((H2, H3)),                                # w3 (bf16)
        _resident((1, H3)),                                 # b3 (f32)
    ]
    out_spec = pl.BlockSpec((blk, H3), lambda i: (i, 0))

    out_itemsize = jnp.dtype(out_dtype).itemsize
    weight_bytes = (NUM_INPUTS * H1 + H1 * H2 + H2 * H3) * 2 + (H1 + H2 + H3) * 4
    flops = 2 * Bp * (NUM_INPUTS * H1 + H1 * H2 + H2 * H3)
    bytes_accessed = (
        Bp * NUM_INPUTS * 4            # x (f32)
        + weight_bytes                 # weights (bf16) + biases (f32)
        + Bp * H3 * out_itemsize       # output
    )

    # Per-step VMEM working set: double-buffered x/out tiles, single-buffered
    # weights, plus f32/bf16 intermediate headroom. Capped at 48 MiB so the
    # same tiling stays safe inside v7x's 64 MiB per-TC VMEM.
    vmem_bytes = (
        2 * blk * NUM_INPUTS * 4       # x tiles (double-buffered, f32)
        + 2 * blk * H3 * out_itemsize  # out tiles (double-buffered)
        + weight_bytes                 # resident weights/biases
        + 3 * blk * H1 * 4             # intermediates headroom
    )
    vmem_limit = max(16 << 20, min(vmem_bytes + (4 << 20), 48 << 20))

    out = pl.pallas_call(
        _mlp_kernel,
        out_shape=jax.ShapeDtypeStruct((Bp, H3), out_dtype),
        grid_spec=pltpu.PrefetchScalarGridSpec(
            num_scalar_prefetch=0,
            grid=grid,
            in_specs=in_specs,
            out_specs=out_spec,
        ),
        compiler_params=pltpu.CompilerParams(
            dimension_semantics=("parallel",),
            vmem_limit_bytes=vmem_limit,
        ),
        cost_estimate=pl.CostEstimate(
            flops=flops,
            transcendentals=0,
            bytes_accessed=bytes_accessed,
        ),
    )(xf, w1b, b1f, w2b, b2f, w3b, b3f)

    return out[:B] if pad_b else out


def init_params(key):
    """Deterministic init mirroring torch.nn.Linear default (uniform +/- 1/sqrt(fan_in)).
    Weights stored as (in_features, out_features)."""
    ks = jax.random.split(key, 6)

    def lin(kw, kb, fan_in, fan_out):
        bound = 1.0 / jnp.sqrt(fan_in)
        w = jax.random.uniform(kw, (fan_in, fan_out), jnp.float32, -bound, bound)
        b = jax.random.uniform(kb, (1, fan_out), jnp.float32, -bound, bound)
        return w, b

    w1, b1 = lin(ks[0], ks[1], NUM_INPUTS, H1)
    w2, b2 = lin(ks[2], ks[3], H1, H2)
    w3, b3 = lin(ks[4], ks[5], H2, H3)
    return w1, b1, w2, b2, w3, b3


def reference_forward(x, w1, b1, w2, b2, w3, b3):
    h = jnp.maximum(x @ w1 + b1, 0.0)
    h = jnp.maximum(h @ w2 + b2, 0.0)
    h = jnp.maximum(h @ w3 + b3, 0.0)
    return h


if __name__ == "__main__":
    key = jax.random.PRNGKey(0)
    k_x, k_p = jax.random.split(key)

    B = 8  # small batch; exercises the small-batch clamp (8-row tile, no padding)
    x = jax.random.normal(k_x, (B, NUM_INPUTS), jnp.float32)
    params = init_params(k_p)

    out = discourse_base_forward(x, *params)
    out = jax.block_until_ready(out)

    ref = reference_forward(x, *params)
    assert out.shape == (B, H3), out.shape
    # bf16 matmul inputs with f32 accumulation -> loosened tolerance vs f32 reference.
    max_err = float(jnp.max(jnp.abs(out - ref)))
    assert max_err < 5e-2, max_err

    print("KERNEL_OK")
</pallas_src>

<mosaic_0001>
module attributes {stable_mosaic.version = 11 : i64} {
  func.func @_mlp_kernel(%arg0: i32, %arg1: memref<8x768xf32, #tpu.memory_space<vmem>>, %arg2: memref<768x512xbf16, #tpu.memory_space<vmem>>, %arg3: memref<1x512xf32, #tpu.memory_space<vmem>>, %arg4: memref<512x512xbf16, #tpu.memory_space<vmem>>, %arg5: memref<1x512xf32, #tpu.memory_space<vmem>>, %arg6: memref<512x256xbf16, #tpu.memory_space<vmem>>, %arg7: memref<1x256xf32, #tpu.memory_space<vmem>>, %arg8: memref<8x256xf32, #tpu.memory_space<vmem>>) attributes {dimension_semantics = [#tpu.dimension_semantics<parallel>], iteration_bounds = array<i64: 1>, scalar_prefetch = 0 : i64, scratch_operands = 0 : i64, tpu.core_type = #tpu.core_type<tc>, window_params = [{transform_indices = @transform_0, window_bounds = array<i64: 8, 768>}, {pipeline_mode = #tpu.pipeline_mode<synchronous>, transform_indices = @transform_1, window_bounds = array<i64: 768, 512>}, {pipeline_mode = #tpu.pipeline_mode<synchronous>, transform_indices = @transform_2, window_bounds = array<i64: 1, 512>}, {pipeline_mode = #tpu.pipeline_mode<synchronous>, transform_indices = @transform_3, window_bounds = array<i64: 512, 512>}, {pipeline_mode = #tpu.pipeline_mode<synchronous>, transform_indices = @transform_4, window_bounds = array<i64: 1, 512>}, {pipeline_mode = #tpu.pipeline_mode<synchronous>, transform_indices = @transform_5, window_bounds = array<i64: 512, 256>}, {pipeline_mode = #tpu.pipeline_mode<synchronous>, transform_indices = @transform_6, window_bounds = array<i64: 1, 256>}, {transform_indices = @transform_7, window_bounds = array<i64: 8, 256>}]} {
    %c0 = arith.constant 0 : index
    %c0_0 = arith.constant 0 : index
    %0 = vector.load %arg1[%c0, %c0_0] : memref<8x768xf32, #tpu.memory_space<vmem>>, vector<8x768xf32>
    %1 = arith.truncf %0 : vector<8x768xf32> to vector<8x768xbf16>
    %c0_1 = arith.constant 0 : index
    %c0_2 = arith.constant 0 : index
    %2 = vector.load %arg2[%c0_1, %c0_2] : memref<768x512xbf16, #tpu.memory_space<vmem>>, vector<768x512xbf16>
    %cst = arith.constant dense<0.000000e+00> : vector<8x512xf32>
    %3 = tpu.matmul %1, %2, %cst {dimension_numbers = #tpu.dot_dimension_numbers<[1], [0], [0], [1], [0, 0, 1, 1], [], []>} : vector<8x768xbf16>, vector<768x512xbf16>, vector<8x512xf32> -> vector<8x512xf32>
    %c0_3 = arith.constant 0 : index
    %c0_4 = arith.constant 0 : index
    %4 = vector.load %arg3[%c0_3, %c0_4] : memref<1x512xf32, #tpu.memory_space<vmem>>, vector<1x512xf32>
    %5 = vector.broadcast %4 : vector<1x512xf32> to vector<8x512xf32>
    %6 = arith.addf %3, %5 : vector<8x512xf32>
    %cst_5 = arith.constant 0.000000e+00 : f32
    %7 = vector.broadcast %cst_5 : f32 to vector<8x512xf32>
    %8 = arith.maximumf %6, %7 : vector<8x512xf32>
    %9 = arith.truncf %8 : vector<8x512xf32> to vector<8x512xbf16>
    %c0_6 = arith.constant 0 : index
    %c0_7 = arith.constant 0 : index
    %10 = vector.load %arg4[%c0_6, %c0_7] : memref<512x512xbf16, #tpu.memory_space<vmem>>, vector<512x512xbf16>
    %cst_8 = arith.constant dense<0.000000e+00> : vector<8x512xf32>
    %11 = tpu.matmul %9, %10, %cst_8 {dimension_numbers = #tpu.dot_dimension_numbers<[1], [0], [0], [1], [0, 0, 1, 1], [], []>} : vector<8x512xbf16>, vector<512x512xbf16>, vector<8x512xf32> -> vector<8x512xf32>
    %c0_9 = arith.constant 0 : index
    %c0_10 = arith.constant 0 : index
    %12 = vector.load %arg5[%c0_9, %c0_10] : memref<1x512xf32, #tpu.memory_space<vmem>>, vector<1x512xf32>
    %13 = vector.broadcast %12 : vector<1x512xf32> to vector<8x512xf32>
    %14 = arith.addf %11, %13 : vector<8x512xf32>
    %cst_11 = arith.constant 0.000000e+00 : f32
    %15 = vector.broadcast %cst_11 : f32 to vector<8x512xf32>
    %16 = arith.maximumf %14, %15 : vector<8x512xf32>
    %17 = arith.truncf %16 : vector<8x512xf32> to vector<8x512xbf16>
    %c0_12 = arith.constant 0 : index
    %c0_13 = arith.constant 0 : index
    %18 = vector.load %arg6[%c0_12, %c0_13] : memref<512x256xbf16, #tpu.memory_space<vmem>>, vector<512x256xbf16>
    %cst_14 = arith.constant dense<0.000000e+00> : vector<8x256xf32>
    %19 = tpu.matmul %17, %18, %cst_14 {dimension_numbers = #tpu.dot_dimension_numbers<[1], [0], [0], [1], [0, 0, 1, 1], [], []>} : vector<8x512xbf16>, vector<512x256xbf16>, vector<8x256xf32> -> vector<8x256xf32>
    %c0_15 = arith.constant 0 : index
    %c0_16 = arith.constant 0 : index
    %20 = vector.load %arg7[%c0_15, %c0_16] : memref<1x256xf32, #tpu.memory_space<vmem>>, vector<1x256xf32>
    %21 = vector.broadcast %20 : vector<1x256xf32> to vector<8x256xf32>
    %22 = arith.addf %19, %21 : vector<8x256xf32>
    %cst_17 = arith.constant 0.000000e+00 : f32
    %23 = vector.broadcast %cst_17 : f32 to vector<8x256xf32>
    %24 = arith.maximumf %22, %23 : vector<8x256xf32>
    %c0_18 = arith.constant 0 : index
    %c0_19 = arith.constant 0 : index
    %25 = vector.load %arg8[%c0_18, %c0_19] : memref<8x256xf32, #tpu.memory_space<vmem>>, vector<8x256xf32>
    tpu.vector_store %arg8[%c0_18, %c0_19], %24 {strides = array<i32>} : memref<8x256xf32, #tpu.memory_space<vmem>>, vector<8x256xf32>,
    return
  }
  func.func @transform_0(%arg0: i32) -> (i32, i32) {
    %c0_i32 = arith.constant 0 : i32
    %c0_i32_0 = arith.constant 0 : i32
    return %arg0, %c0_i32 : i32, i32
  }
  func.func @transform_1(%arg0: i32) -> (i32, i32) {
    %c0_i32 = arith.constant 0 : i32
    %c0_i32_0 = arith.constant 0 : i32
    %c0_i32_1 = arith.constant 0 : i32
    return %c0_i32, %c0_i32_0 : i32, i32
  }
  func.func @transform_2(%arg0: i32) -> (i32, i32) {
    %c0_i32 = arith.constant 0 : i32
    %c0_i32_0 = arith.constant 0 : i32
    %c0_i32_1 = arith.constant 0 : i32
    return %c0_i32, %c0_i32_0 : i32, i32
  }
  func.func @transform_3(%arg0: i32) -> (i32, i32) {
    %c0_i32 = arith.constant 0 : i32
    %c0_i32_0 = arith.constant 0 : i32
    %c0_i32_1 = arith.constant 0 : i32
    return %c0_i32, %c0_i32_0 : i32, i32
  }
  func.func @transform_4(%arg0: i32) -> (i32, i32) {
    %c0_i32 = arith.constant 0 : i32
    %c0_i32_0 = arith.constant 0 : i32
    %c0_i32_1 = arith.constant 0 : i32
    return %c0_i32, %c0_i32_0 : i32, i32
  }
  func.func @transform_5(%arg0: i32) -> (i32, i32) {
    %c0_i32 = arith.constant 0 : i32
    %c0_i32_0 = arith.constant 0 : i32
    %c0_i32_1 = arith.constant 0 : i32
    return %c0_i32, %c0_i32_0 : i32, i32
  }
  func.func @transform_6(%arg0: i32) -> (i32, i32) {
    %c0_i32 = arith.constant 0 : i32
    %c0_i32_0 = arith.constant 0 : i32
    %c0_i32_1 = arith.constant 0 : i32
    return %c0_i32, %c0_i32_0 : i32, i32
  }
  func.func @transform_7(%arg0: i32) -> (i32, i32) {
    %c0_i32 = arith.constant 0 : i32
    %c0_i32_0 = arith.constant 0 : i32
    return %arg0, %c0_i32 : i32, i32
  }
}

</mosaic_0001>

<llo_original>
// kernel: discourse_base_forward.1
$region0: #{discourse_base_forward.1}
  #allocation0 [shape = 'u32[]', space=smem, size = 0x4, offset = 0x4, fixed_abs, tag = 'smem constant byte address 0x4 - core index']
  #allocation1 [shape = 'u32[144,128]{1,0:T(1,128)}', space=vmem, size = 0x12000, scoped, tag = 'internal scratch']
  %s0 = inlined_call_operand.vmem [shape: f32[8,768], index: 0, kind: input, shape index: {}]
  %s1 = inlined_call_operand.vmem [shape: bf16[768,512], index: 1, kind: input, shape index: {}]
  %s2 = inlined_call_operand.vmem [shape: f32[1,512], index: 2, kind: input, shape index: {}]
  %s3 = inlined_call_operand.vmem [shape: bf16[512,512], index: 3, kind: input, shape index: {}]
  %s4 = inlined_call_operand.vmem [shape: f32[1,512], index: 4, kind: input, shape index: {}]
  %s5 = inlined_call_operand.vmem [shape: bf16[512,256], index: 5, kind: input, shape index: {}]
  %s6 = inlined_call_operand.vmem [shape: f32[1,256], index: 6, kind: input, shape index: {}]
  %s7 = inlined_call_operand.hbm [shape: f32[8,256], index: 7, kind: output, shape index: {}]
  %s8 = sld [smem:[#allocation0]]
  $region38: #{discourse_base_forward.1} parent=0
    _
  %s10 = ssub.s32 1, %s8
  %s11 = scalar_select 0, %s10, %s8
  $region1: #{discourse_base_forward.1} parent=0
    #allocation2 [shape = 'u8[8192]{0}', space=vmem, size = 0x2000, scoped, tag = 'output window, operand 0, single buffered']
    #allocation3 [shape = 's32[1]{0}', space=sflag, size = 0x4, scoped, tag = 'scoped memory for discourse_base_forward.1']
    %12 = vsyncpa [#allocation3], 0
    // Predicated region
    $region2: #{discourse_base_forward.1} parent=1 // pred_check
      _
    $region3: #{discourse_base_forward.1} parent=1 // pred_check_branch
      %14 = sbr.rel (0) target = $region5
    $region4: #{discourse_base_forward.1} parent=1 // pred_region
      _
    $region5: #{discourse_base_forward.1} parent=1 // pred_fallthru
      _
    // Predicated region
    $region6: #{discourse_base_forward.1} parent=1 // pred_check
      _
    $region7: #{discourse_base_forward.1} parent=1 // pred_check_branch
      %16 = sbr.rel (0) target = $region9
    $region8: #{discourse_base_forward.1} parent=1 // pred_region
      _
    $region9: #{discourse_base_forward.1} parent=1 // pred_fallthru
      _
    // Predicated region
    $region10: #{discourse_base_forward.1} parent=1 // pred_check
      _
    $region11: #{discourse_base_forward.1} parent=1 // pred_check_branch
      %18 = sbr.rel (0) target = $region13
    $region12: #{discourse_base_forward.1} parent=1 // pred_region
      _
    $region13: #{discourse_base_forward.1} parent=1 // pred_fallthru
      _
    // Predicated region
    $region14: #{discourse_base_forward.1} parent=1 // pred_check
      _
    $region15: #{discourse_base_forward.1} parent=1 // pred_check_branch
      %20 = sbr.rel (0) target = $region17
    $region16: #{discourse_base_forward.1} parent=1 // pred_region
      _
    $region17: #{discourse_base_forward.1} parent=1 // pred_fallthru
      _
    // Predicated region
    $region18: #{discourse_base_forward.1} parent=1 // pred_check
      _
    $region19: #{discourse_base_forward.1} parent=1 // pred_check_branch
      %22 = sbr.rel (0) target = $region21
    $region20: #{discourse_base_forward.1} parent=1 // pred_region
      _
    $region21: #{discourse_base_forward.1} parent=1 // pred_fallthru
      _
    // Predicated region
    $region22: #{discourse_base_forward.1} parent=1 // pred_check
      _
    $region23: #{discourse_base_forward.1} parent=1 // pred_check_branch
      %24 = sbr.rel (0) target = $region25
    $region24: #{discourse_base_forward.1} parent=1 // pred_region
      _
    $region25: #{discourse_base_forward.1} parent=1 // pred_fallthru
      _
    // Predicated region
    $region26: #{discourse_base_forward.1} parent=1 // pred_check
      _
    $region27: #{discourse_base_forward.1} parent=1 // pred_check_branch
      %26 = sbr.rel (0) target = $region29
    $region28: #{discourse_base_forward.1} parent=1 // pred_region
      _
    $region29: #{discourse_base_forward.1} parent=1 // pred_fallthru
      _
    %v27 = vld [vmem:[%s0] sm:$0xff]
    %v28 = vld [vmem:[%s0 + $0x8] sm:$0xff]
    %v29 = vld [vmem:[%s0 + $0x10] sm:$0xff]
    %v30 = vld [vmem:[%s0 + $0x18] sm:$0xff]
    %v31 = vld [vmem:[%s0 + $0x20] sm:$0xff]
    %v32 = vld [vmem:[%s0 + $0x28] sm:$0xff]
    %v33 = vpack.c.bf16 %v27, %v27
    %v34 = vpack.c.bf16 %v28, %v28
    %v35 = vpack.c.bf16 %v29, %v29
    %v36 = vpack.c.bf16 %v30, %v30
    %v37 = vpack.c.bf16 %v31, %v31
    %v38 = vpack.c.bf16 %v32, %v32
    %v39 = vld [vmem:[%s1] sm:$0xff]
    %v40 = vld [vmem:[%s1 + $0x8] sm:$0xff]
    %v41 = vld [vmem:[%s1 + $0x10] sm:$0xff]
    %v42 = vld [vmem:[%s1 + $0x18] sm:$0xff]
    %v43 = vld [vmem:[%s1 + $0x20] sm:$0xff]
    %v44 = vld [vmem:[%s1 + $0x28] sm:$0xff]
    %v45 = vld [vmem:[%s1 + $0x30] sm:$0xff]
    %v46 = vld [vmem:[%s1 + $0x38] sm:$0xff]
    %v47 = vld [vmem:[%s1 + $0x40] sm:$0xff]
    %v48 = vld [vmem:[%s1 + $0x48] sm:$0xff]
    %v49 = vld [vmem:[%s1 + $0x50] sm:$0xff]
    %v50 = vld [vmem:[%s1 + $0x58] sm:$0xff]
    %v51 = vld [vmem:[%s1 + $0x60] sm:$0xff]
    %v52 = vld [vmem:[%s1 + $0x68] sm:$0xff]
    %v53 = vld [vmem:[%s1 + $0x70] sm:$0xff]
    %v54 = vld [vmem:[%s1 + $0x78] sm:$0xff]
    %v55 = vld [vmem:[%s1 + $0x80] sm:$0xff]
    %v56 = vld [vmem:[%s1 + $0x88] sm:$0xff]
    %v57 = vld [vmem:[%s1 + $0x90] sm:$0xff]
    %v58 = vld [vmem:[%s1 + $0x98] sm:$0xff]
    %v59 = vld [vmem:[%s1 + $0xa0] sm:$0xff]
    %v60 = vld [vmem:[%s1 + $0xa8] sm:$0xff]
    %v61 = vld [vmem:[%s1 + $0xb0] sm:$0xff]
    %v62 = vld [vmem:[%s1 + $0xb8] sm:$0xff]
    %v63 = vld [vmem:[%s1 + $0xc0] sm:$0xff]
    %v64 = vld [vmem:[%s1 + $0xc8] sm:$0xff]
    %v65 = vld [vmem:[%s1 + $0xd0] sm:$0xff]
    %v66 = vld [vmem:[%s1 + $0xd8] sm:$0xff]
    %v67 = vld [vmem:[%s1 + $0xe0] sm:$0xff]
    %v68 = vld [vmem:[%s1 + $0xe8] sm:$0xff]
    %v69 = vld [vmem:[%s1 + $0xf0] sm:$0xff]
    %v70 = vld [vmem:[%s1 + $0xf8] sm:$0xff]
    %v71 = vld [vmem:[%s1 + $0x100] sm:$0xff]
    %v72 = vld [vmem:[%s1 + $0x108] sm:$0xff]
    %v73 = vld [vmem:[%s1 + $0x110] sm:$0xff]
    %v74 = vld [vmem:[%s1 + $0x118] sm:$0xff]
    %v75 = vld [vmem:[%s1 + $0x120] sm:$0xff]
    %v76 = vld [vmem:[%s1 + $0x128] sm:$0xff]
    %v77 = vld [vmem:[%s1 + $0x130] sm:$0xff]
    %v78 = vld [vmem:[%s1 + $0x138] sm:$0xff]
    %v79 = vld [vmem:[%s1 + $0x140] sm:$0xff]
    %v80 = vld [vmem:[%s1 + $0x148] sm:$0xff]
    %v81 = vld [vmem:[%s1 + $0x150] sm:$0xff]
    %v82 = vld [vmem:[%s1 + $0x158] sm:$0xff]
    %v83 = vld [vmem:[%s1 + $0x160] sm:$0xff]
    %v84 = vld [vmem:[%s1 + $0x168] sm:$0xff]
    %v85 = vld [vmem:[%s1 + $0x170] sm:$0xff]
    %v86 = vld [vmem:[%s1 + $0x178] sm:$0xff]
    %v87 = vld [vmem:[%s1 + $0x180] sm:$0xff]
    %v88 = vld [vmem:[%s1 + $0x188] sm:$0xff]
    %v89 = vld [vmem:[%s1 + $0x190] sm:$0xff]
    %v90 = vld [vmem:[%s1 + $0x198] sm:$0xff]
    %v91 = vld [vmem:[%s1 + $0x1a0] sm:$0xff]
    %v92 = vld [vmem:[%s1 + $0x1a8] sm:$0xff]
    %v93 = vld [vmem:[%s1 + $0x1b0] sm:$0xff]
    %v94 = vld [vmem:[%s1 + $0x1b8] sm:$0xff]
    %v95 = vld [vmem:[%s1 + $0x1c0] sm:$0xff]
    %v96 = vld [vmem:[%s1 + $0x1c8] sm:$0xff]
    %v97 = vld [vmem:[%s1 + $0x1d0] sm:$0xff]
    %v98 = vld [vmem:[%s1 + $0x1d8] sm:$0xff]
    %v99 = vld [vmem:[%s1 + $0x1e0] sm:$0xff]
    %v100 = vld [vmem:[%s1 + $0x1e8] sm:$0xff]
    %v101 = vld [vmem:[%s1 + $0x1f0] sm:$0xff]
    %v102 = vld [vmem:[%s1 + $0x1f8] sm:$0xff]
    %v103 = vld [vmem:[%s1 + $0x200] sm:$0xff]
    %v104 = vld [vmem:[%s1 + $0x208] sm:$0xff]
    %v105 = vld [vmem:[%s1 + $0x210] sm:$0xff]
    %v106 = vld [vmem:[%s1 + $0x218] sm:$0xff]
    %v107 = vld [vmem:[%s1 + $0x220] sm:$0xff]
    %v108 = vld [vmem:[%s1 + $0x228] sm:$0xff]
    %v109 = vld [vmem:[%s1 + $0x230] sm:$0xff]
    %v110 = vld [vmem:[%s1 + $0x238] sm:$0xff]
    %v111 = vld [vmem:[%s1 + $0x240] sm:$0xff]
    %v112 = vld [vmem:[%s1 + $0x248] sm:$0xff]
    %v113 = vld [vmem:[%s1 + $0x250] sm:$0xff]
    %v114 = vld [vmem:[%s1 + $0x258] sm:$0xff]
    %v115 = vld [vmem:[%s1 + $0x260] sm:$0xff]
    %v116 = vld [vmem:[%s1 + $0x268] sm:$0xff]
    %v117 = vld [vmem:[%s1 + $0x270] sm:$0xff]
    %v118 = vld [vmem:[%s1 + $0x278] sm:$0xff]
    %v119 = vld [vmem:[%s1 + $0x280] sm:$0xff]
    %v120 = vld [vmem:[%s1 + $0x288] sm:$0xff]
    %v121 = vld [vmem:[%s1 + $0x290] sm:$0xff]
    %v122 = vld [vmem:[%s1 + $0x298] sm:$0xff]
    %v123 = vld [vmem:[%s1 + $0x2a0] sm:$0xff]
    %v124 = vld [vmem:[%s1 + $0x2a8] sm:$0xff]
    %v125 = vld [vmem:[%s1 + $0x2b0] sm:$0xff]
    %v126 = vld [vmem:[%s1 + $0x2b8] sm:$0xff]
    %v127 = vld [vmem:[%s1 + $0x2c0] sm:$0xff]
    %v128 = vld [vmem:[%s1 + $0x2c8] sm:$0xff]
    %v129 = vld [vmem:[%s1 + $0x2d0] sm:$0xff]
    %v130 = vld [vmem:[%s1 + $0x2d8] sm:$0xff]
    %v131 = vld [vmem:[%s1 + $0x2e0] sm:$0xff]
    %v132 = vld [vmem:[%s1 + $0x2e8] sm:$0xff]
    %v133 = vld [vmem:[%s1 + $0x2f0] sm:$0xff]
    %v134 = vld [vmem:[%s1 + $0x2f8] sm:$0xff]
    %v135 = vld [vmem:[%s1 + $0x300] sm:$0xff]
    %v136 = vld [vmem:[%s1 + $0x308] sm:$0xff]
    %v137 = vld [vmem:[%s1 + $0x310] sm:$0xff]
    %v138 = vld [vmem:[%s1 + $0x318] sm:$0xff]
    %v139 = vld [vmem:[%s1 + $0x320] sm:$0xff]
    %v140 = vld [vmem:[%s1 + $0x328] sm:$0xff]
    %v141 = vld [vmem:[%s1 + $0x330] sm:$0xff]
    %v142 = vld [vmem:[%s1 + $0x338] sm:$0xff]
    %v143 = vld [vmem:[%s1 + $0x340] sm:$0xff]
    %v144 = vld [vmem:[%s1 + $0x348] sm:$0xff]
    %v145 = vld [vmem:[%s1 + $0x350] sm:$0xff]
    %v146 = vld [vmem:[%s1 + $0x358] sm:$0xff]
    %v147 = vld [vmem:[%s1 + $0x360] sm:$0xff]
    %v148 = vld [vmem:[%s1 + $0x368] sm:$0xff]
    %v149 = vld [vmem:[%s1 + $0x370] sm:$0xff]
    %v150 = vld [vmem:[%s1 + $0x378] sm:$0xff]
    %v151 = vld [vmem:[%s1 + $0x380] sm:$0xff]
    %v152 = vld [vmem:[%s1 + $0x388] sm:$0xff]
    %v153 = vld [vmem:[%s1 + $0x390] sm:$0xff]
    %v154 = vld [vmem:[%s1 + $0x398] sm:$0xff]
    %v155 = vld [vmem:[%s1 + $0x3a0] sm:$0xff]
    %v156 = vld [vmem:[%s1 + $0x3a8] sm:$0xff]
    %v157 = vld [vmem:[%s1 + $0x3b0] sm:$0xff]
    %v158 = vld [vmem:[%s1 + $0x3b8] sm:$0xff]
    %v159 = vld [vmem:[%s1 + $0x3c0] sm:$0xff]
    %v160 = vld [vmem:[%s1 + $0x3c8] sm:$0xff]
    %v161 = vld [vmem:[%s1 + $0x3d0] sm:$0xff]
    %v162 = vld [vmem:[%s1 + $0x3d8] sm:$0xff]
    %v163 = vld [vmem:[%s1 + $0x3e0] sm:$0xff]
    %v164 = vld [vmem:[%s1 + $0x3e8] sm:$0xff]
    %v165 = vld [vmem:[%s1 + $0x3f0] sm:$0xff]
    %v166 = vld [vmem:[%s1 + $0x3f8] sm:$0xff]
    %v167 = vld [vmem:[%s1 + $0x400] sm:$0xff]
    %v168 = vld [vmem:[%s1 + $0x408] sm:$0xff]
    %v169 = vld [vmem:[%s1 + $0x410] sm:$0xff]
    %v170 = vld [vmem:[%s1 + $0x418] sm:$0xff]
    %v171 = vld [vmem:[%s1 + $0x420] sm:$0xff]
    %v172 = vld [vmem:[%s1 + $0x428] sm:$0xff]
    %v173 = vld [vmem:[%s1 + $0x430] sm:$0xff]
    %v174 = vld [vmem:[%s1 + $0x438] sm:$0xff]
    %v175 = vld [vmem:[%s1 + $0x440] sm:$0xff]
    %v176 = vld [vmem:[%s1 + $0x448] sm:$0xff]
    %v177 = vld [vmem:[%s1 + $0x450] sm:$0xff]
    %v178 = vld [vmem:[%s1 + $0x458] sm:$0xff]
    %v179 = vld [vmem:[%s1 + $0x460] sm:$0xff]
    %v180 = vld [vmem:[%s1 + $0x468] sm:$0xff]
    %v181 = vld [vmem:[%s1 + $0x470] sm:$0xff]
    %v182 = vld [vmem:[%s1 + $0x478] sm:$0xff]
    %v183 = vld [vmem:[%s1 + $0x480] sm:$0xff]
    %v184 = vld [vmem:[%s1 + $0x488] sm:$0xff]
    %v185 = vld [vmem:[%s1 + $0x490] sm:$0xff]
    %v186 = vld [vmem:[%s1 + $0x498] sm:$0xff]
    %v187 = vld [vmem:[%s1 + $0x4a0] sm:$0xff]
    %v188 = vld [vmem:[%s1 + $0x4a8] sm:$0xff]
    %v189 = vld [vmem:[%s1 + $0x4b0] sm:$0xff]
    %v190 = vld [vmem:[%s1 + $0x4b8] sm:$0xff]
    %v191 = vld [vmem:[%s1 + $0x4c0] sm:$0xff]
    %v192 = vld [vmem:[%s1 + $0x4c8] sm:$0xff]
    %v193 = vld [vmem:[%s1 + $0x4d0] sm:$0xff]
    %v194 = vld [vmem:[%s1 + $0x4d8] sm:$0xff]
    %v195 = vld [vmem:[%s1 + $0x4e0] sm:$0xff]
    %v196 = vld [vmem:[%s1 + $0x4e8] sm:$0xff]
    %v197 = vld [vmem:[%s1 + $0x4f0] sm:$0xff]
    %v198 = vld [vmem:[%s1 + $0x4f8] sm:$0xff]
    %v199 = vld [vmem:[%s1 + $0x500] sm:$0xff]
    %v200 = vld [vmem:[%s1 + $0x508] sm:$0xff]
    %v201 = vld [vmem:[%s1 + $0x510] sm:$0xff]
    %v202 = vld [vmem:[%s1 + $0x518] sm:$0xff]
    %v203 = vld [vmem:[%s1 + $0x520] sm:$0xff]
    %v204 = vld [vmem:[%s1 + $0x528] sm:$0xff]
    %v205 = vld [vmem:[%s1 + $0x530] sm:$0xff]
    %v206 = vld [vmem:[%s1 + $0x538] sm:$0xff]
    %v207 = vld [vmem:[%s1 + $0x540] sm:$0xff]
    %v208 = vld [vmem:[%s1 + $0x548] sm:$0xff]
    %v209 = vld [vmem:[%s1 + $0x550] sm:$0xff]
    %v210 = vld [vmem:[%s1 + $0x558] sm:$0xff]
    %v211 = vld [vmem:[%s1 + $0x560] sm:$0xff]
    %v212 = vld [vmem:[%s1 + $0x568] sm:$0xff]
    %v213 = vld [vmem:[%s1 + $0x570] sm:$0xff]
    %v214 = vld [vmem:[%s1 + $0x578] sm:$0xff]
    %v215 = vld [vmem:[%s1 + $0x580] sm:$0xff]
    %v216 = vld [vmem:[%s1 + $0x588] sm:$0xff]
    %v217 = vld [vmem:[%s1 + $0x590] sm:$0xff]
    %v218 = vld [vmem:[%s1 + $0x598] sm:$0xff]
    %v219 = vld [vmem:[%s1 + $0x5a0] sm:$0xff]
    %v220 = vld [vmem:[%s1 + $0x5a8] sm:$0xff]
    %v221 = vld [vmem:[%s1 + $0x5b0] sm:$0xff]
    %v222 = vld [vmem:[%s1 + $0x5b8] sm:$0xff]
    %v223 = vld [vmem:[%s1 + $0x5c0] sm:$0xff]
    %v224 = vld [vmem:[%s1 + $0x5c8] sm:$0xff]
    %v225 = vld [vmem:[%s1 + $0x5d0] sm:$0xff]
    %v226 = vld [vmem:[%s1 + $0x5d8] sm:$0xff]
    %v227 = vld [vmem:[%s1 + $0x5e0] sm:$0xff]
    %v228 = vld [vmem:[%s1 + $0x5e8] sm:$0xff]
    %v229 = vld [vmem:[%s1 + $0x5f0] sm:$0xff]
    %v230 = vld [vmem:[%s1 + $0x5f8] sm:$0xff]
    %v231 = vld [vmem:[%s2] sm:$0xf]
    %v233 = vlaneseq
    %v234 = vshrl.u32 %v233, 7
    %v235 = vsub.s32 0, %v234
    %v236 = vrot.slane %v231, %v235
    %v237 = vlaneseq
    %v238 = vshrl.u32 %v237, 7
    %v239 = vsub.s32 1, %v238
    %v240 = vrot.slane %v231, %v239
    %v241 = vlaneseq
    %v242 = vshrl.u32 %v241, 7
    %v243 = vsub.s32 2, %v242
    %v244 = vrot.slane %v231, %v243
    %v245 = vlaneseq
    %v246 = vshrl.u32 %v245, 7
    %v247 = vsub.s32 3, %v246
    %v248 = vrot.slane %v231, %v247
    %v445 = vunpack.c.l.b16 %v39
    %v446 = vunpack.c.h.b16 %v39
    %v447 = vunpack.c.l.b16 %v40
    %v448 = vunpack.c.h.b16 %v40
    %v449 = vunpack.c.l.b16 %v41
    %v450 = vunpack.c.h.b16 %v41
    %v451 = vunpack.c.l.b16 %v42
    %v452 = vunpack.c.h.b16 %v42
    %v453 = vunpack.c.l.b16 %v43
    %v454 = vunpack.c.h.b16 %v43
    %v455 = vunpack.c.l.b16 %v44
    %v456 = vunpack.c.h.b16 %v44
    %v457 = vunpack.c.l.b16 %v45
    %v458 = vunpack.c.h.b16 %v45
    %v459 = vunpack.c.l.b16 %v46
    %v460 = vunpack.c.h.b16 %v46
    %v461 = vunpack.c.l.b16 %v47
    %v462 = vunpack.c.h.b16 %v47
    %v463 = vunpack.c.l.b16 %v48
    %v464 = vunpack.c.h.b16 %v48
    %v465 = vunpack.c.l.b16 %v49
    %v466 = vunpack.c.h.b16 %v49
    %v467 = vunpack.c.l.b16 %v50
    %v468 = vunpack.c.h.b16 %v50
    %v469 = vunpack.c.l.b16 %v51
    %v470 = vunpack.c.h.b16 %v51
    %v471 = vunpack.c.l.b16 %v52
    %v472 = vunpack.c.h.b16 %v52
    %v473 = vunpack.c.l.b16 %v53
    %v474 = vunpack.c.h.b16 %v53
    %v475 = vunpack.c.l.b16 %v54
    %v476 = vunpack.c.h.b16 %v54
    %v477 = vunpack.c.l.b16 %v55
    %v478 = vunpack.c.h.b16 %v55
    %v479 = vunpack.c.l.b16 %v56
    %v480 = vunpack.c.h.b16 %v56
    %v481 = vunpack.c.l.b16 %v57
    %v482 = vunpack.c.h.b16 %v57
    %v483 = vunpack.c.l.b16 %v58
    %v484 = vunpack.c.h.b16 %v58
    %v485 = vunpack.c.l.b16 %v59
    %v486 = vunpack.c.h.b16 %v59
    %v487 = vunpack.c.l.b16 %v60
    %v488 = vunpack.c.h.b16 %v60
    %v489 = vunpack.c.l.b16 %v61
    %v490 = vunpack.c.h.b16 %v61
    %v491 = vunpack.c.l.b16 %v62
    %v492 = vunpack.c.h.b16 %v62
    %v493 = vunpack.c.l.b16 %v63
    %v494 = vunpack.c.h.b16 %v63
    %v495 = vunpack.c.l.b16 %v64
    %v496 = vunpack.c.h.b16 %v64
    %v497 = vunpack.c.l.b16 %v65
    %v498 = vunpack.c.h.b16 %v65
    %v499 = vunpack.c.l.b16 %v66
    %v500 = vunpack.c.h.b16 %v66
    %v501 = vunpack.c.l.b16 %v67
    %v502 = vunpack.c.h.b16 %v67
    %v503 = vunpack.c.l.b16 %v68
    %v504 = vunpack.c.h.b16 %v68
    %v505 = vunpack.c.l.b16 %v69
    %v506 = vunpack.c.h.b16 %v69
    %v507 = vunpack.c.l.b16 %v70
    %v508 = vunpack.c.h.b16 %v70
    %v509 = vunpack.c.l.b16 %v71
    %v510 = vunpack.c.h.b16 %v71
    %v511 = vunpack.c.l.b16 %v72
    %v512 = vunpack.c.h.b16 %v72
    %v513 = vunpack.c.l.b16 %v73
    %v514 = vunpack.c.h.b16 %v73
    %v515 = vunpack.c.l.b16 %v74
    %v516 = vunpack.c.h.b16 %v74
    %v517 = vunpack.c.l.b16 %v75
    %v518 = vunpack.c.h.b16 %v75
    %v519 = vunpack.c.l.b16 %v76
    %v520 = vunpack.c.h.b16 %v76
    %v521 = vunpack.c.l.b16 %v77
    %v522 = vunpack.c.h.b16 %v77
    %v523 = vunpack.c.l.b16 %v78
    %v524 = vunpack.c.h.b16 %v78
    %v525 = vunpack.c.l.b16 %v79
    %v526 = vunpack.c.h.b16 %v79
    %v527 = vunpack.c.l.b16 %v80
    %v528 = vunpack.c.h.b16 %v80
    %v529 = vunpack.c.l.b16 %v81
    %v530 = vunpack.c.h.b16 %v81
    %v531 = vunpack.c.l.b16 %v82
    %v532 = vunpack.c.h.b16 %v82
    %v533 = vunpack.c.l.b16 %v83
    %v534 = vunpack.c.h.b16 %v83
    %v535 = vunpack.c.l.b16 %v84
    %v536 = vunpack.c.h.b16 %v84
    %v537 = vunpack.c.l.b16 %v85
    %v538 = vunpack.c.h.b16 %v85
    %v539 = vunpack.c.l.b16 %v86
    %v540 = vunpack.c.h.b16 %v86
    %v541 = vunpack.c.l.b16 %v87
    %v542 = vunpack.c.h.b16 %v87
    %v543 = vunpack.c.l.b16 %v88
    %v544 = vunpack.c.h.b16 %v88
    %v545 = vunpack.c.l.b16 %v89
    %v546 = vunpack.c.h.b16 %v89
    %v547 = vunpack.c.l.b16 %v90
    %v548 = vunpack.c.h.b16 %v90
    %v549 = vunpack.c.l.b16 %v91
    %v550 = vunpack.c.h.b16 %v91
    %v551 = vunpack.c.l.b16 %v92
    %v552 = vunpack.c.h.b16 %v92
    %v553 = vunpack.c.l.b16 %v93
    %v554 = vunpack.c.h.b16 %v93
    %v555 = vunpack.c.l.b16 %v94
    %v556 = vunpack.c.h.b16 %v94
    %v557 = vunpack.c.l.b16 %v95
    %v558 = vunpack.c.h.b16 %v95
    %v559 = vunpack.c.l.b16 %v96
    %v560 = vunpack.c.h.b16 %v96
    %v561 = vunpack.c.l.b16 %v97
    %v562 = vunpack.c.h.b16 %v97
    %v563 = vunpack.c.l.b16 %v98
    %v564 = vunpack.c.h.b16 %v98
    %v565 = vunpack.c.l.b16 %v99
    %v566 = vunpack.c.h.b16 %v99
    %v567 = vunpack.c.l.b16 %v100
    %v568 = vunpack.c.h.b16 %v100
    %v569 = vunpack.c.l.b16 %v101
    %v570 = vunpack.c.h.b16 %v101
    %v571 = vunpack.c.l.b16 %v102
    %v572 = vunpack.c.h.b16 %v102
    %v573 = vunpack.c.l.b16 %v103
    %v574 = vunpack.c.h.b16 %v103
    %v575 = vunpack.c.l.b16 %v104
    %v576 = vunpack.c.h.b16 %v104
    %v577 = vunpack.c.l.b16 %v105
    %v578 = vunpack.c.h.b16 %v105
    %v579 = vunpack.c.l.b16 %v106
    %v580 = vunpack.c.h.b16 %v106
    %v581 = vunpack.c.l.b16 %v107
    %v582 = vunpack.c.h.b16 %v107
    %v583 = vunpack.c.l.b16 %v108
    %v584 = vunpack.c.h.b16 %v108
    %v585 = vunpack.c.l.b16 %v109
    %v586 = vunpack.c.h.b16 %v109
    %v587 = vunpack.c.l.b16 %v110
    %v588 = vunpack.c.h.b16 %v110
    %v589 = vunpack.c.l.b16 %v111
    %v590 = vunpack.c.h.b16 %v111
    %v591 = vunpack.c.l.b16 %v112
    %v592 = vunpack.c.h.b16 %v112
    %v593 = vunpack.c.l.b16 %v113
    %v594 = vunpack.c.h.b16 %v113
    %v595 = vunpack.c.l.b16 %v114
    %v596 = vunpack.c.h.b16 %v114
    %v597 = vunpack.c.l.b16 %v115
    %v598 = vunpack.c.h.b16 %v115
    %v599 = vunpack.c.l.b16 %v116
    %v600 = vunpack.c.h.b16 %v116
    %v601 = vunpack.c.l.b16 %v117
    %v602 = vunpack.c.h.b16 %v117
    %v603 = vunpack.c.l.b16 %v118
    %v604 = vunpack.c.h.b16 %v118
    %v605 = vunpack.c.l.b16 %v119
    %v606 = vunpack.c.h.b16 %v119
    %v607 = vunpack.c.l.b16 %v120
    %v608 = vunpack.c.h.b16 %v120
    %v609 = vunpack.c.l.b16 %v121
    %v610 = vunpack.c.h.b16 %v121
    %v611 = vunpack.c.l.b16 %v122
    %v612 = vunpack.c.h.b16 %v122
    %v613 = vunpack.c.l.b16 %v123
    %v614 = vunpack.c.h.b16 %v123
    %v615 = vunpack.c.l.b16 %v124
    %v616 = vunpack.c.h.b16 %v124
    %v617 = vunpack.c.l.b16 %v125
    %v618 = vunpack.c.h.b16 %v125
    %v619 = vunpack.c.l.b16 %v126
    %v620 = vunpack.c.h.b16 %v126
    %v621 = vunpack.c.l.b16 %v127
    %v622 = vunpack.c.h.b16 %v127
    %v623 = vunpack.c.l.b16 %v128
    %v624 = vunpack.c.h.b16 %v128
    %v625 = vunpack.c.l.b16 %v129
    %v626 = vunpack.c.h.b16 %v129
    %v627 = vunpack.c.l.b16 %v130
    %v628 = vunpack.c.h.b16 %v130
    %v629 = vunpack.c.l.b16 %v131
    %v630 = vunpack.c.h.b16 %v131
    %v631 = vunpack.c.l.b16 %v132
    %v632 = vunpack.c.h.b16 %v132
    %v633 = vunpack.c.l.b16 %v133
    %v634 = vunpack.c.h.b16 %v133
    %v635 = vunpack.c.l.b16 %v134
    %v636 = vunpack.c.h.b16 %v134
    %v637 = vunpack.c.l.b16 %v135
    %v638 = vunpack.c.h.b16 %v135
    %v639 = vunpack.c.l.b16 %v136
    %v640 = vunpack.c.h.b16 %v136
    %v641 = vunpack.c.l.b16 %v137
    %v642 = vunpack.c.h.b16 %v137
    %v643 = vunpack.c.l.b16 %v138
    %v644 = vunpack.c.h.b16 %v138
    %v645 = vunpack.c.l.b16 %v139
    %v646 = vunpack.c.h.b16 %v139
    %v647 = vunpack.c.l.b16 %v140
    %v648 = vunpack.c.h.b16 %v140
    %v649 = vunpack.c.l.b16 %v141
    %v650 = vunpack.c.h.b16 %v141
    %v651 = vunpack.c.l.b16 %v142
    %v652 = vunpack.c.h.b16 %v142
    %v653 = vunpack.c.l.b16 %v143
    %v654 = vunpack.c.h.b16 %v143
    %v655 = vunpack.c.l.b16 %v144
    %v656 = vunpack.c.h.b16 %v144
    %v657 = vunpack.c.l.b16 %v145
    %v658 = vunpack.c.h.b16 %v145
    %v659 = vunpack.c.l.b16 %v146
    %v660 = vunpack.c.h.b16 %v146
    %v661 = vunpack.c.l.b16 %v147
    %v662 = vunpack.c.h.b16 %v147
    %v663 = vunpack.c.l.b16 %v148
    %v664 = vunpack.c.h.b16 %v148
    %v665 = vunpack.c.l.b16 %v149
    %v666 = vunpack.c.h.b16 %v149
    %v667 = vunpack.c.l.b16 %v150
    %v668 = vunpack.c.h.b16 %v150
    %v669 = vunpack.c.l.b16 %v151
    %v670 = vunpack.c.h.b16 %v151
    %v671 = vunpack.c.l.b16 %v152
    %v672 = vunpack.c.h.b16 %v152
    %v673 = vunpack.c.l.b16 %v153
    %v674 = vunpack.c.h.b16 %v153
    %v675 = vunpack.c.l.b16 %v154
    %v676 = vunpack.c.h.b16 %v154
    %v677 = vunpack.c.l.b16 %v155
    %v678 = vunpack.c.h.b16 %v155
    %v679 = vunpack.c.l.b16 %v156
    %v680 = vunpack.c.h.b16 %v156
    %v681 = vunpack.c.l.b16 %v157
    %v682 = vunpack.c.h.b16 %v157
    %v683 = vunpack.c.l.b16 %v158
    %v684 = vunpack.c.h.b16 %v158
    %v685 = vunpack.c.l.b16 %v159
    %v686 = vunpack.c.h.b16 %v159
    %v687 = vunpack.c.l.b16 %v160
    %v688 = vunpack.c.h.b16 %v160
    %v689 = vunpack.c.l.b16 %v161
    %v690 = vunpack.c.h.b16 %v161
    %v691 = vunpack.c.l.b16 %v162
    %v692 = vunpack.c.h.b16 %v162
    %v693 = vunpack.c.l.b16 %v163
    %v694 = vunpack.c.h.b16 %v163
    %v695 = vunpack.c.l.b16 %v164
    %v696 = vunpack.c.h.b16 %v164
    %v697 = vunpack.c.l.b16 %v165
    %v698 = vunpack.c.h.b16 %v165
    %v699 = vunpack.c.l.b16 %v166
    %v700 = vunpack.c.h.b16 %v166
    %v701 = vunpack.c.l.b16 %v167
    %v702 = vunpack.c.h.b16 %v167
    %v703 = vunpack.c.l.b16 %v168
    %v704 = vunpack.c.h.b16 %v168
    %v705 = vunpack.c.l.b16 %v169
    %v706 = vunpack.c.h.b16 %v169
    %v707 = vunpack.c.l.b16 %v170
    %v708 = vunpack.c.h.b16 %v170
    %v709 = vunpack.c.l.b16 %v171
    %v710 = vunpack.c.h.b16 %v171
    %v711 = vunpack.c.l.b16 %v172
    %v712 = vunpack.c.h.b16 %v172
    %v713 = vunpack.c.l.b16 %v173
    %v714 = vunpack.c.h.b16 %v173
    %v715 = vunpack.c.l.b16 %v174
    %v716 = vunpack.c.h.b16 %v174
    %v717 = vunpack.c.l.b16 %v175
    %v718 = vunpack.c.h.b16 %v175
    %v719 = vunpack.c.l.b16 %v176
    %v720 = vunpack.c.h.b16 %v176
    %v721 = vunpack.c.l.b16 %v177
    %v722 = vunpack.c.h.b16 %v177
    %v723 = vunpack.c.l.b16 %v178
    %v724 = vunpack.c.h.b16 %v178
    %v725 = vunpack.c.l.b16 %v179
    %v726 = vunpack.c.h.b16 %v179
    %v727 = vunpack.c.l.b16 %v180
    %v728 = vunpack.c.h.b16 %v180
    %v729 = vunpack.c.l.b16 %v181
    %v730 = vunpack.c.h.b16 %v181
    %v731 = vunpack.c.l.b16 %v182
    %v732 = vunpack.c.h.b16 %v182
    %v733 = vunpack.c.l.b16 %v183
    %v734 = vunpack.c.h.b16 %v183
    %v735 = vunpack.c.l.b16 %v184
    %v736 = vunpack.c.h.b16 %v184
    %v737 = vunpack.c.l.b16 %v185
    %v738 = vunpack.c.h.b16 %v185
    %v739 = vunpack.c.l.b16 %v186
    %v740 = vunpack.c.h.b16 %v186
    %v741 = vunpack.c.l.b16 %v187
    %v742 = vunpack.c.h.b16 %v187
    %v743 = vunpack.c.l.b16 %v188
    %v744 = vunpack.c.h.b16 %v188
    %v745 = vunpack.c.l.b16 %v189
    %v746 = vunpack.c.h.b16 %v189
    %v747 = vunpack.c.l.b16 %v190
    %v748 = vunpack.c.h.b16 %v190
    %v749 = vunpack.c.l.b16 %v191
    %v750 = vunpack.c.h.b16 %v191
    %v751 = vunpack.c.l.b16 %v192
    %v752 = vunpack.c.h.b16 %v192
    %v753 = vunpack.c.l.b16 %v193
    %v754 = vunpack.c.h.b16 %v193
    %v755 = vunpack.c.l.b16 %v194
    %v756 = vunpack.c.h.b16 %v194
    %v757 = vunpack.c.l.b16 %v195
    %v758 = vunpack.c.h.b16 %v195
    %v759 = vunpack.c.l.b16 %v196
    %v760 = vunpack.c.h.b16 %v196
    %v761 = vunpack.c.l.b16 %v197
    %v762 = vunpack.c.h.b16 %v197
    %v763 = vunpack.c.l.b16 %v198
    %v764 = vunpack.c.h.b16 %v198
    %v765 = vunpack.c.l.b16 %v199
    %v766 = vunpack.c.h.b16 %v199
    %v767 = vunpack.c.l.b16 %v200
    %v768 = vunpack.c.h.b16 %v200
    %v769 = vunpack.c.l.b16 %v201
    %v770 = vunpack.c.h.b16 %v201
    %v771 = vunpack.c.l.b16 %v202
    %v772 = vunpack.c.h.b16 %v202
    %v773 = vunpack.c.l.b16 %v203
    %v774 = vunpack.c.h.b16 %v203
    %v775 = vunpack.c.l.b16 %v204
    %v776 = vunpack.c.h.b16 %v204
    %v777 = vunpack.c.l.b16 %v205
    %v778 = vunpack.c.h.b16 %v205
    %v779 = vunpack.c.l.b16 %v206
    %v780 = vunpack.c.h.b16 %v206
    %v781 = vunpack.c.l.b16 %v207
    %v782 = vunpack.c.h.b16 %v207
    %v783 = vunpack.c.l.b16 %v208
    %v784 = vunpack.c.h.b16 %v208
    %v785 = vunpack.c.l.b16 %v209
    %v786 = vunpack.c.h.b16 %v209
    %v787 = vunpack.c.l.b16 %v210
    %v788 = vunpack.c.h.b16 %v210
    %v789 = vunpack.c.l.b16 %v211
    %v790 = vunpack.c.h.b16 %v211
    %v791 = vunpack.c.l.b16 %v212
    %v792 = vunpack.c.h.b16 %v212
    %v793 = vunpack.c.l.b16 %v213
    %v794 = vunpack.c.h.b16 %v213
    %v795 = vunpack.c.l.b16 %v214
    %v796 = vunpack.c.h.b16 %v214
    %v797 = vunpack.c.l.b16 %v215
    %v798 = vunpack.c.h.b16 %v215
    %v799 = vunpack.c.l.b16 %v216
    %v800 = vunpack.c.h.b16 %v216
    %v801 = vunpack.c.l.b16 %v217
    %v802 = vunpack.c.h.b16 %v217
    %v803 = vunpack.c.l.b16 %v218
    %v804 = vunpack.c.h.b16 %v218
    %v805 = vunpack.c.l.b16 %v219
    %v806 = vunpack.c.h.b16 %v219
    %v807 = vunpack.c.l.b16 %v220
    %v808 = vunpack.c.h.b16 %v220
    %v809 = vunpack.c.l.b16 %v221
    %v810 = vunpack.c.h.b16 %v221
    %v811 = vunpack.c.l.b16 %v222
    %v812 = vunpack.c.h.b16 %v222
    %v813 = vunpack.c.l.b16 %v223
    %v814 = vunpack.c.h.b16 %v223
    %v815 = vunpack.c.l.b16 %v224
    %v816 = vunpack.c.h.b16 %v224
    %v817 = vunpack.c.l.b16 %v225
    %v818 = vunpack.c.h.b16 %v225
    %v819 = vunpack.c.l.b16 %v226
    %v820 = vunpack.c.h.b16 %v226
    %v821 = vunpack.c.l.b16 %v227
    %v822 = vunpack.c.h.b16 %v227
    %v823 = vunpack.c.l.b16 %v228
    %v824 = vunpack.c.h.b16 %v228
    %v825 = vunpack.c.l.b16 %v229
    %v826 = vunpack.c.h.b16 %v229
    %v827 = vunpack.c.l.b16 %v230
    %v828 = vunpack.c.h.b16 %v230
    %v829 = vpack.c.b16 %v449, %v445
    %v830 = vpack.c.b16 %v450, %v446
    %v831 = vpack.c.b16 %v451, %v447
    %v832 = vpack.c.b16 %v452, %v448
    %v833 = vpack.c.b16 %v457, %v453
    %v834 = vpack.c.b16 %v458, %v454
    %v835 = vpack.c.b16 %v459, %v455
    %v836 = vpack.c.b16 %v460, %v456
    %v837 = vpack.c.b16 %v465, %v461
    %v838 = vpack.c.b16 %v466, %v462
    %v839 = vpack.c.b16 %v467, %v463
    %v840 = vpack.c.b16 %v468, %v464
    %v841 = vpack.c.b16 %v473, %v469
    %v842 = vpack.c.b16 %v474, %v470
    %v843 = vpack.c.b16 %v475, %v471
    %v844 = vpack.c.b16 %v476, %v472
    %v845 = vpack.c.b16 %v481, %v477
    %v846 = vpack.c.b16 %v482, %v478
    %v847 = vpack.c.b16 %v483, %v479
    %v848 = vpack.c.b16 %v484, %v480
    %v849 = vpack.c.b16 %v489, %v485
    %v850 = vpack.c.b16 %v490, %v486
    %v851 = vpack.c.b16 %v491, %v487
    %v852 = vpack.c.b16 %v492, %v488
    %v853 = vpack.c.b16 %v497, %v493
    %v854 = vpack.c.b16 %v498, %v494
    %v855 = vpack.c.b16 %v499, %v495
    %v856 = vpack.c.b16 %v500, %v496
    %v857 = vpack.c.b16 %v505, %v501
    %v858 = vpack.c.b16 %v506, %v502
    %v859 = vpack.c.b16 %v507, %v503
    %v860 = vpack.c.b16 %v508, %v504
    %v861 = vpack.c.b16 %v513, %v509
    %v862 = vpack.c.b16 %v514, %v510
    %v863 = vpack.c.b16 %v515, %v511
    %v864 = vpack.c.b16 %v516, %v512
    %v865 = vpack.c.b16 %v521, %v517
    %v866 = vpack.c.b16 %v522, %v518
    %v867 = vpack.c.b16 %v523, %v519
    %v868 = vpack.c.b16 %v524, %v520
    %v869 = vpack.c.b16 %v529, %v525
    %v870 = vpack.c.b16 %v530, %v526
    %v871 = vpack.c.b16 %v531, %v527
    %v872 = vpack.c.b16 %v532, %v528
    %v873 = vpack.c.b16 %v537, %v533
    %v874 = vpack.c.b16 %v538, %v534
    %v875 = vpack.c.b16 %v539, %v535
    %v876 = vpack.c.b16 %v540, %v536
    %v877 = vpack.c.b16 %v545, %v541
    %v878 = vpack.c.b16 %v546, %v542
    %v879 = vpack.c.b16 %v547, %v543
    %v880 = vpack.c.b16 %v548, %v544
    %v881 = vpack.c.b16 %v553, %v549
    %v882 = vpack.c.b16 %v554, %v550
    %v883 = vpack.c.b16 %v555, %v551
    %v884 = vpack.c.b16 %v556, %v552
    %v885 = vpack.c.b16 %v561, %v557
    %v886 = vpack.c.b16 %v562, %v558
    %v887 = vpack.c.b16 %v563, %v559
    %v888 = vpack.c.b16 %v564, %v560
    %v889 = vpack.c.b16 %v569, %v565
    %v890 = vpack.c.b16 %v570, %v566
    %v891 = vpack.c.b16 %v571, %v567
    %v892 = vpack.c.b16 %v572, %v568
    %v893 = vpack.c.b16 %v577, %v573
    %v894 = vpack.c.b16 %v578, %v574
    %v895 = vpack.c.b16 %v579, %v575
    %v896 = vpack.c.b16 %v580, %v576
    %v897 = vpack.c.b16 %v585, %v581
    %v898 = vpack.c.b16 %v586, %v582
    %v899 = vpack.c.b16 %v587, %v583
    %v900 = vpack.c.b16 %v588, %v584
    %v901 = vpack.c.b16 %v593, %v589
    %v902 = vpack.c.b16 %v594, %v590
    %v903 = vpack.c.b16 %v595, %v591
    %v904 = vpack.c.b16 %v596, %v592
    %v905 = vpack.c.b16 %v601, %v597
    %v906 = vpack.c.b16 %v602, %v598
    %v907 = vpack.c.b16 %v603, %v599
    %v908 = vpack.c.b16 %v604, %v600
    %v909 = vpack.c.b16 %v609, %v605
    %v910 = vpack.c.b16 %v610, %v606
    %v911 = vpack.c.b16 %v611, %v607
    %v912 = vpack.c.b16 %v612, %v608
    %v913 = vpack.c.b16 %v617, %v613
    %v914 = vpack.c.b16 %v618, %v614
    %v915 = vpack.c.b16 %v619, %v615
    %v916 = vpack.c.b16 %v620, %v616
    %v917 = vpack.c.b16 %v625, %v621
    %v918 = vpack.c.b16 %v626, %v622
    %v919 = vpack.c.b16 %v627, %v623
    %v920 = vpack.c.b16 %v628, %v624
    %v921 = vpack.c.b16 %v633, %v629
    %v922 = vpack.c.b16 %v634, %v630
    %v923 = vpack.c.b16 %v635, %v631
    %v924 = vpack.c.b16 %v636, %v632
    %v925 = vpack.c.b16 %v641, %v637
    %v926 = vpack.c.b16 %v642, %v638
    %v927 = vpack.c.b16 %v643, %v639
    %v928 = vpack.c.b16 %v644, %v640
    %v929 = vpack.c.b16 %v649, %v645
    %v930 = vpack.c.b16 %v650, %v646
    %v931 = vpack.c.b16 %v651, %v647
    %v932 = vpack.c.b16 %v652, %v648
    %v933 = vpack.c.b16 %v657, %v653
    %v934 = vpack.c.b16 %v658, %v654
    %v935 = vpack.c.b16 %v659, %v655
    %v936 = vpack.c.b16 %v660, %v656
    %v937 = vpack.c.b16 %v665, %v661
    %v938 = vpack.c.b16 %v666, %v662
    %v939 = vpack.c.b16 %v667, %v663
    %v940 = vpack.c.b16 %v668, %v664
    %v941 = vpack.c.b16 %v673, %v669
    %v942 = vpack.c.b16 %v674, %v670
    %v943 = vpack.c.b16 %v675, %v671
    %v944 = vpack.c.b16 %v676, %v672
    %v945 = vpack.c.b16 %v681, %v677
    %v946 = vpack.c.b16 %v682, %v678
    %v947 = vpack.c.b16 %v683, %v679
    %v948 = vpack.c.b16 %v684, %v680
    %v949 = vpack.c.b16 %v689, %v685
    %v950 = vpack.c.b16 %v690, %v686
    %v951 = vpack.c.b16 %v691, %v687
    %v952 = vpack.c.b16 %v692, %v688
    %v953 = vpack.c.b16 %v697, %v693
    %v954 = vpack.c.b16 %v698, %v694
    %v955 = vpack.c.b16 %v699, %v695
    %v956 = vpack.c.b16 %v700, %v696
    %v957 = vpack.c.b16 %v705, %v701
    %v958 = vpack.c.b16 %v706, %v702
    %v959 = vpack.c.b16 %v707, %v703
    %v960 = vpack.c.b16 %v708, %v704
    %v961 = vpack.c.b16 %v713, %v709
    %v962 = vpack.c.b16 %v714, %v710
    %v963 = vpack.c.b16 %v715, %v711
    %v964 = vpack.c.b16 %v716, %v712
    %v965 = vpack.c.b16 %v721, %v717
    %v966 = vpack.c.b16 %v722, %v718
    %v967 = vpack.c.b16 %v723, %v719
    %v968 = vpack.c.b16 %v724, %v720
    %v969 = vpack.c.b16 %v729, %v725
    %v970 = vpack.c.b16 %v730, %v726
    %v971 = vpack.c.b16 %v731, %v727
    %v972 = vpack.c.b16 %v732, %v728
    %v973 = vpack.c.b16 %v737, %v733
    %v974 = vpack.c.b16 %v738, %v734
    %v975 = vpack.c.b16 %v739, %v735
    %v976 = vpack.c.b16 %v740, %v736
    %v977 = vpack.c.b16 %v745, %v741
    %v978 = vpack.c.b16 %v746, %v742
    %v979 = vpack.c.b16 %v747, %v743
    %v980 = vpack.c.b16 %v748, %v744
    %v981 = vpack.c.b16 %v753, %v749
    %v982 = vpack.c.b16 %v754, %v750
    %v983 = vpack.c.b16 %v755, %v751
    %v984 = vpack.c.b16 %v756, %v752
    %v985 = vpack.c.b16 %v761, %v757
    %v986 = vpack.c.b16 %v762, %v758
    %v987 = vpack.c.b16 %v763, %v759
    %v988 = vpack.c.b16 %v764, %v760
    %v989 = vpack.c.b16 %v769, %v765
    %v990 = vpack.c.b16 %v770, %v766
    %v991 = vpack.c.b16 %v771, %v767
    %v992 = vpack.c.b16 %v772, %v768
    %v993 = vpack.c.b16 %v777, %v773
    %v994 = vpack.c.b16 %v778, %v774
    %v995 = vpack.c.b16 %v779, %v775
    %v996 = vpack.c.b16 %v780, %v776
    %v997 = vpack.c.b16 %v785, %v781
    %v998 = vpack.c.b16 %v786, %v782
    %v999 = vpack.c.b16 %v787, %v783
    %v1000 = vpack.c.b16 %v788, %v784
    %v1001 = vpack.c.b16 %v793, %v789
    %v1002 = vpack.c.b16 %v794, %v790
    %v1003 = vpack.c.b16 %v795, %v791
    %v1004 = vpack.c.b16 %v796, %v792
    %v1005 = vpack.c.b16 %v801, %v797
    %v1006 = vpack.c.b16 %v802, %v798
    %v1007 = vpack.c.b16 %v803, %v799
    %v1008 = vpack.c.b16 %v804, %v800
    %v1009 = vpack.c.b16 %v809, %v805
    %v1010 = vpack.c.b16 %v810, %v806
    %v1011 = vpack.c.b16 %v811, %v807
    %v1012 = vpack.c.b16 %v812, %v808
    %v1013 = vpack.c.b16 %v817, %v813
    %v1014 = vpack.c.b16 %v818, %v814
    %v1015 = vpack.c.b16 %v819, %v815
    %v1016 = vpack.c.b16 %v820, %v816
    %v1017 = vpack.c.b16 %v825, %v821
    %v1018 = vpack.c.b16 %v826, %v822
    %v1019 = vpack.c.b16 %v827, %v823
    %v1020 = vpack.c.b16 %v828, %v824
    %1213 = vmatprep.subr.bf16.mxu0 %v858
    %1214 = vmatpush1.bf16.msra.mxu0 %v857
    %1215 = vmatprep.subr.bf16.mxu0 %v854
    %1216 = vmatpush1.bf16.msra.mxu0 %v853
    %1217 = vmatprep.subr.bf16.mxu0 %v850
    %1218 = vmatpush1.bf16.msra.mxu0 %v849
    %1219 = vmatprep.subr.bf16.mxu0 %v846
    %1220 = vmatpush1.bf16.msra.mxu0 %v845
    %1221 = vmatprep.subr.bf16.mxu0 %v842
    %1222 = vmatpush1.bf16.msra.mxu0 %v841
    %1223 = vmatprep.subr.bf16.mxu0 %v838
    %1224 = vmatpush1.bf16.msra.mxu0 %v837
    %1225 = vmatprep.subr.bf16.mxu0 %v834
    %1226 = vmatpush1.bf16.msra.mxu0 %v833
    %1227 = vmatprep.subr.bf16.mxu0 %v830
    %1228 = vmatpush1.bf16.msra.mxu0 %v829
    %1229 = vmatprep.subr.bf16.mxu0 %v890
    %1230 = vmatpush2.bf16.msra.mxu0 %v889
    %1231 = vmatprep.subr.bf16.mxu0 %v886
    %1232 = vmatpush2.bf16.msra.mxu0 %v885
    %1233 = vmatprep.subr.bf16.mxu0 %v882
    %1234 = vmatpush2.bf16.msra.mxu0 %v881
    %1235 = vmatprep.subr.bf16.mxu0 %v878
    %1236 = vmatpush2.bf16.msra.mxu0 %v877
    %1237 = vmatprep.subr.bf16.mxu0 %v874
    %1238 = vmatpush2.bf16.msra.mxu0 %v873
    %1239 = vmatprep.subr.bf16.mxu0 %v870
    %1240 = vmatpush2.bf16.msra.mxu0 %v869
    %1241 = vmatprep.subr.bf16.mxu0 %v866
    %1242 = vmatpush2.bf16.msra.mxu0 %v865
    %1243 = vmatprep.subr.bf16.mxu0 %v862
    %1244 = vmatpush2.bf16.msra.mxu0 %v861
    %1245 = vmatprep.mubr.bf16.mxu0 %v34
    %1246 = vmatmul.mubr.bf16.gmra.mxu0 %v33
    %v1247 = vpop.f32.mrf.mxu0
    %v1248 = vadd.f32 %v236, %v1247
    %v1249 = vpop.f32.mrf.mxu0
    %v1250 = vadd.f32 %v240, %v1249
    %v1251 = vpop.f32.mrf.mxu0
    %v1252 = vpop.f32.mrf.mxu0
    %1253 = vdwg.mxu0
    %1254 = vmatprep.subr.bf16.mxu0 %v922
    %1255 = vmatpush1.bf16.msra.mxu0 %v921
    %1256 = vmatprep.subr.bf16.mxu0 %v918
    %1257 = vmatpush1.bf16.msra.mxu0 %v917
    %1258 = vmatprep.subr.bf16.mxu0 %v914
    %1259 = vmatpush1.bf16.msra.mxu0 %v913
    %1260 = vmatprep.subr.bf16.mxu0 %v910
    %1261 = vmatpush1.bf16.msra.mxu0 %v909
    %1262 = vmatprep.subr.bf16.mxu0 %v906
    %1263 = vmatpush1.bf16.msra.mxu0 %v905
    %1264 = vmatprep.subr.bf16.mxu0 %v902
    %1265 = vmatpush1.bf16.msra.mxu0 %v901
    %1266 = vmatprep.subr.bf16.mxu0 %v898
    %1267 = vmatpush1.bf16.msra.mxu0 %v897
    %1268 = vmatprep.subr.bf16.mxu0 %v894
    %1269 = vmatpush1.bf16.msra.mxu0 %v893
    %1270 = vmatprep.subr.bf16.mxu0 %v954
    %1271 = vmatpush2.bf16.msra.mxu0 %v953
    %1272 = vmatprep.subr.bf16.mxu0 %v950
    %1273 = vmatpush2.bf16.msra.mxu0 %v949
    %1274 = vmatprep.subr.bf16.mxu0 %v946
    %1275 = vmatpush2.bf16.msra.mxu0 %v945
    %1276 = vmatprep.subr.bf16.mxu0 %v942
    %1277 = vmatpush2.bf16.msra.mxu0 %v941
    %1278 = vmatprep.subr.bf16.mxu0 %v938
    %1279 = vmatpush2.bf16.msra.mxu0 %v937
    %1280 = vmatprep.subr.bf16.mxu0 %v934
    %1281 = vmatpush2.bf16.msra.mxu0 %v933
    %1282 = vmatprep.subr.bf16.mxu0 %v930
    %1283 = vmatpush2.bf16.msra.mxu0 %v929
    %1284 = vmatprep.subr.bf16.mxu0 %v926
    %1285 = vmatpush2.bf16.msra.mxu0 %v925
    %1286 = vmatprep.mubr.bf16.mxu0 %v36
    %1287 = vmatmul.mubr.bf16.gmra.mxu0 %v35
    %v1288 = vpop.f32.mrf.mxu0
    %v1289 = vadd.f32 %v1248, %v1288
    %v1290 = vpop.f32.mrf.mxu0
    %v1291 = vadd.f32 %v1250, %v1290
    %v1292 = vpop.f32.mrf.mxu0
    %v1293 = vpop.f32.mrf.mxu0
    %1294 = vdwg.mxu0
    %1295 = vmatprep.subr.bf16.mxu0 %v986
    %1296 = vmatpush1.bf16.msra.mxu0 %v985
    %1297 = vmatprep.subr.bf16.mxu0 %v982
    %1298 = vmatpush1.bf16.msra.mxu0 %v981
    %1299 = vmatprep.subr.bf16.mxu0 %v978
    %1300 = vmatpush1.bf16.msra.mxu0 %v977
    %1301 = vmatprep.subr.bf16.mxu0 %v974
    %1302 = vmatpush1.bf16.msra.mxu0 %v973
    %1303 = vmatprep.subr.bf16.mxu0 %v970
    %1304 = vmatpush1.bf16.msra.mxu0 %v969
    %1305 = vmatprep.subr.bf16.mxu0 %v966
    %1306 = vmatpush1.bf16.msra.mxu0 %v965
    %1307 = vmatprep.subr.bf16.mxu0 %v962
    %1308 = vmatpush1.bf16.msra.mxu0 %v961
    %1309 = vmatprep.subr.bf16.mxu0 %v958
    %1310 = vmatpush1.bf16.msra.mxu0 %v957
    %1311 = vmatprep.subr.bf16.mxu0 %v1018
    %1312 = vmatpush2.bf16.msra.mxu0 %v1017
    %1313 = vmatprep.subr.bf16.mxu0 %v1014
    %1314 = vmatpush2.bf16.msra.mxu0 %v1013
    %1315 = vmatprep.subr.bf16.mxu0 %v1010
    %1316 = vmatpush2.bf16.msra.mxu0 %v1009
    %1317 = vmatprep.subr.bf16.mxu0 %v1006
    %1318 = vmatpush2.bf16.msra.mxu0 %v1005
    %1319 = vmatprep.subr.bf16.mxu0 %v1002
    %1320 = vmatpush2.bf16.msra.mxu0 %v1001
    %1321 = vmatprep.subr.bf16.mxu0 %v998
    %1322 = vmatpush2.bf16.msra.mxu0 %v997
    %1323 = vmatprep.subr.bf16.mxu0 %v994
    %1324 = vmatpush2.bf16.msra.mxu0 %v993
    %1325 = vmatprep.subr.bf16.mxu0 %v990
    %1326 = vmatpush2.bf16.msra.mxu0 %v989
    %1327 = vmatprep.mubr.bf16.mxu0 %v38
    %1328 = vmatmul.mubr.bf16.gmra.mxu0 %v37
    %v1329 = vpop.f32.mrf.mxu0
    %v1330 = vadd.f32 %v1289, %v1329
    %v1331 = vpop.f32.mrf.mxu0
    %v1332 = vadd.f32 %v1291, %v1331
    %v1333 = vpop.f32.mrf.mxu0
    %v1334 = vpop.f32.mrf.mxu0
    %1335 = vdwg.mxu0
    %1336 = vmatprep.subr.bf16.mxu0 %v860
    %1337 = vmatpush1.bf16.msra.mxu0 %v859
    %1338 = vmatprep.subr.bf16.mxu0 %v856
    %1339 = vmatpush1.bf16.msra.mxu0 %v855
    %1340 = vmatprep.subr.bf16.mxu0 %v852
    %1341 = vmatpush1.bf16.msra.mxu0 %v851
    %1342 = vmatprep.subr.bf16.mxu0 %v848
    %1343 = vmatpush1.bf16.msra.mxu0 %v847
    %1344 = vmatprep.subr.bf16.mxu0 %v844
    %1345 = vmatpush1.bf16.msra.mxu0 %v843
    %1346 = vmatprep.subr.bf16.mxu0 %v840
    %1347 = vmatpush1.bf16.msra.mxu0 %v839
    %1348 = vmatprep.subr.bf16.mxu0 %v836
    %1349 = vmatpush1.bf16.msra.mxu0 %v835
    %1350 = vmatprep.subr.bf16.mxu0 %v832
    %1351 = vmatpush1.bf16.msra.mxu0 %v831
    %1352 = vmatprep.subr.bf16.mxu0 %v892
    %1353 = vmatpush2.bf16.msra.mxu0 %v891
    %1354 = vmatprep.subr.bf16.mxu0 %v888
    %1355 = vmatpush2.bf16.msra.mxu0 %v887
    %1356 = vmatprep.subr.bf16.mxu0 %v884
    %1357 = vmatpush2.bf16.msra.mxu0 %v883
    %1358 = vmatprep.subr.bf16.mxu0 %v880
    %1359 = vmatpush2.bf16.msra.mxu0 %v879
    %1360 = vmatprep.subr.bf16.mxu0 %v876
    %1361 = vmatpush2.bf16.msra.mxu0 %v875
    %1362 = vmatprep.subr.bf16.mxu0 %v872
    %1363 = vmatpush2.bf16.msra.mxu0 %v871
    %1364 = vmatprep.subr.bf16.mxu0 %v868
    %1365 = vmatpush2.bf16.msra.mxu0 %v867
    %1366 = vmatprep.subr.bf16.mxu0 %v864
    %1367 = vmatpush2.bf16.msra.mxu0 %v863
    %1368 = vmatprep.mubr.bf16.mxu0 %v34
    %1369 = vmatmul.mubr.bf16.gmra.mxu0 %v33
    %v1370 = vpop.f32.mrf.mxu0
    %v1371 = vadd.f32 %v244, %v1370
    %v1372 = vpop.f32.mrf.mxu0
    %v1373 = vadd.f32 %v248, %v1372
    %v1374 = vpop.f32.mrf.mxu0
    %v1375 = vpop.f32.mrf.mxu0
    %1376 = vdwg.mxu0
    %1377 = vmatprep.subr.bf16.mxu0 %v924
    %1378 = vmatpush1.bf16.msra.mxu0 %v923
    %1379 = vmatprep.subr.bf16.mxu0 %v920
    %1380 = vmatpush1.bf16.msra.mxu0 %v919
    %1381 = vmatprep.subr.bf16.mxu0 %v916
    %1382 = vmatpush1.bf16.msra.mxu0 %v915
    %1383 = vmatprep.subr.bf16.mxu0 %v912
    %1384 = vmatpush1.bf16.msra.mxu0 %v911
    %1385 = vmatprep.subr.bf16.mxu0 %v908
    %1386 = vmatpush1.bf16.msra.mxu0 %v907
    %1387 = vmatprep.subr.bf16.mxu0 %v904
    %1388 = vmatpush1.bf16.msra.mxu0 %v903
    %1389 = vmatprep.subr.bf16.mxu0 %v900
    %1390 = vmatpush1.bf16.msra.mxu0 %v899
    %1391 = vmatprep.subr.bf16.mxu0 %v896
    %1392 = vmatpush1.bf16.msra.mxu0 %v895
    %1393 = vmatprep.subr.bf16.mxu0 %v956
    %1394 = vmatpush2.bf16.msra.mxu0 %v955
    %1395 = vmatprep.subr.bf16.mxu0 %v952
    %1396 = vmatpush2.bf16.msra.mxu0 %v951
    %1397 = vmatprep.subr.bf16.mxu0 %v948
    %1398 = vmatpush2.bf16.msra.mxu0 %v947
    %1399 = vmatprep.subr.bf16.mxu0 %v944
    %1400 = vmatpush2.bf16.msra.mxu0 %v943
    %1401 = vmatprep.subr.bf16.mxu0 %v940
    %1402 = vmatpush2.bf16.msra.mxu0 %v939
    %1403 = vmatprep.subr.bf16.mxu0 %v936
    %1404 = vmatpush2.bf16.msra.mxu0 %v935
    %1405 = vmatprep.subr.bf16.mxu0 %v932
    %1406 = vmatpush2.bf16.msra.mxu0 %v931
    %1407 = vmatprep.subr.bf16.mxu0 %v928
    %1408 = vmatpush2.bf16.msra.mxu0 %v927
    %1409 = vmatprep.mubr.bf16.mxu0 %v36
    %1410 = vmatmul.mubr.bf16.gmra.mxu0 %v35
    %v1411 = vpop.f32.mrf.mxu0
    %v1412 = vadd.f32 %v1371, %v1411
    %v1413 = vpop.f32.mrf.mxu0
    %v1414 = vadd.f32 %v1373, %v1413
    %v1415 = vpop.f32.mrf.mxu0
    %v1416 = vpop.f32.mrf.mxu0
    %1417 = vdwg.mxu0
    %1418 = vmatprep.subr.bf16.mxu0 %v988
    %1419 = vmatpush1.bf16.msra.mxu0 %v987
    %1420 = vmatprep.subr.bf16.mxu0 %v984
    %1421 = vmatpush1.bf16.msra.mxu0 %v983
    %1422 = vmatprep.subr.bf16.mxu0 %v980
    %1423 = vmatpush1.bf16.msra.mxu0 %v979
    %1424 = vmatprep.subr.bf16.mxu0 %v976
    %1425 = vmatpush1.bf16.msra.mxu0 %v975
    %1426 = vmatprep.subr.bf16.mxu0 %v972
    %1427 = vmatpush1.bf16.msra.mxu0 %v971
    %1428 = vmatprep.subr.bf16.mxu0 %v968
    %1429 = vmatpush1.bf16.msra.mxu0 %v967
    %1430 = vmatprep.subr.bf16.mxu0 %v964
    %1431 = vmatpush1.bf16.msra.mxu0 %v963
    %1432 = vmatprep.subr.bf16.mxu0 %v960
    %1433 = vmatpush1.bf16.msra.mxu0 %v959
    %1434 = vmatprep.subr.bf16.mxu0 %v1020
    %1435 = vmatpush2.bf16.msra.mxu0 %v1019
    %1436 = vmatprep.subr.bf16.mxu0 %v1016
    %1437 = vmatpush2.bf16.msra.mxu0 %v1015
    %1438 = vmatprep.subr.bf16.mxu0 %v1012
    %1439 = vmatpush2.bf16.msra.mxu0 %v1011
    %1440 = vmatprep.subr.bf16.mxu0 %v1008
    %1441 = vmatpush2.bf16.msra.mxu0 %v1007
    %1442 = vmatprep.subr.bf16.mxu0 %v1004
    %1443 = vmatpush2.bf16.msra.mxu0 %v1003
    %1444 = vmatprep.subr.bf16.mxu0 %v1000
    %1445 = vmatpush2.bf16.msra.mxu0 %v999
    %1446 = vmatprep.subr.bf16.mxu0 %v996
    %1447 = vmatpush2.bf16.msra.mxu0 %v995
    %1448 = vmatprep.subr.bf16.mxu0 %v992
    %1449 = vmatpush2.bf16.msra.mxu0 %v991
    %1450 = vmatprep.mubr.bf16.mxu0 %v38
    %1451 = vmatmul.mubr.bf16.gmra.mxu0 %v37
    %v1452 = vpop.f32.mrf.mxu0
    %v1453 = vadd.f32 %v1412, %v1452
    %v1454 = vpop.f32.mrf.mxu0
    %v1455 = vadd.f32 %v1414, %v1454
    %v1456 = vpop.f32.mrf.mxu0
    %v1457 = vpop.f32.mrf.mxu0
    %1458 = vdwg.mxu0
    %v1459 = vmax.f32 %v1330, 0.0
    %v1460 = vmax.f32 %v1332, 0.0
    %v1461 = vmax.f32 %v1453, 0.0
    %v1462 = vmax.f32 %v1455, 0.0
    %v1463 = vpack.c.bf16 %v1459, %v1459
    %v1464 = vpack.c.bf16 %v1460, %v1460
    %v1465 = vpack.c.bf16 %v1461, %v1461
    %v1466 = vpack.c.bf16 %v1462, %v1462
    %v1467 = vld [vmem:[%s3] sm:$0xff]
    %v1468 = vld [vmem:[%s3 + $0x8] sm:$0xff]
    %v1469 = vld [vmem:[%s3 + $0x10] sm:$0xff]
    %v1470 = vld [vmem:[%s3 + $0x18] sm:$0xff]
    %v1471 = vld [vmem:[%s3 + $0x20] sm:$0xff]
    %v1472 = vld [vmem:[%s3 + $0x28] sm:$0xff]
    %v1473 = vld [vmem:[%s3 + $0x30] sm:$0xff]
    %v1474 = vld [vmem:[%s3 + $0x38] sm:$0xff]
    %v1475 = vld [vmem:[%s3 + $0x40] sm:$0xff]
    %v1476 = vld [vmem:[%s3 + $0x48] sm:$0xff]
    %v1477 = vld [vmem:[%s3 + $0x50] sm:$0xff]
    %v1478 = vld [vmem:[%s3 + $0x58] sm:$0xff]
    %v1479 = vld [vmem:[%s3 + $0x60] sm:$0xff]
    %v1480 = vld [vmem:[%s3 + $0x68] sm:$0xff]
    %v1481 = vld [vmem:[%s3 + $0x70] sm:$0xff]
    %v1482 = vld [vmem:[%s3 + $0x78] sm:$0xff]
    %v1483 = vld [vmem:[%s3 + $0x80] sm:$0xff]
    %v1484 = vld [vmem:[%s3 + $0x88] sm:$0xff]
    %v1485 = vld [vmem:[%s3 + $0x90] sm:$0xff]
    %v1486 = vld [vmem:[%s3 + $0x98] sm:$0xff]
    %v1487 = vld [vmem:[%s3 + $0xa0] sm:$0xff]
    %v1488 = vld [vmem:[%s3 + $0xa8] sm:$0xff]
    %v1489 = vld [vmem:[%s3 + $0xb0] sm:$0xff]
    %v1490 = vld [vmem:[%s3 + $0xb8] sm:$0xff]
    %v1491 = vld [vmem:[%s3 + $0xc0] sm:$0xff]
    %v1492 = vld [vmem:[%s3 + $0xc8] sm:$0xff]
    %v1493 = vld [vmem:[%s3 + $0xd0] sm:$0xff]
    %v1494 = vld [vmem:[%s3 + $0xd8] sm:$0xff]
    %v1495 = vld [vmem:[%s3 + $0xe0] sm:$0xff]
    %v1496 = vld [vmem:[%s3 + $0xe8] sm:$0xff]
    %v1497 = vld [vmem:[%s3 + $0xf0] sm:$0xff]
    %v1498 = vld [vmem:[%s3 + $0xf8] sm:$0xff]
    %v1499 = vld [vmem:[%s3 + $0x100] sm:$0xff]
    %v1500 = vld [vmem:[%s3 + $0x108] sm:$0xff]
    %v1501 = vld [vmem:[%s3 + $0x110] sm:$0xff]
    %v1502 = vld [vmem:[%s3 + $0x118] sm:$0xff]
    %v1503 = vld [vmem:[%s3 + $0x120] sm:$0xff]
    %v1504 = vld [vmem:[%s3 + $0x128] sm:$0xff]
    %v1505 = vld [vmem:[%s3 + $0x130] sm:$0xff]
    %v1506 = vld [vmem:[%s3 + $0x138] sm:$0xff]
    %v1507 = vld [vmem:[%s3 + $0x140] sm:$0xff]
    %v1508 = vld [vmem:[%s3 + $0x148] sm:$0xff]
    %v1509 = vld [vmem:[%s3 + $0x150] sm:$0xff]
    %v1510 = vld [vmem:[%s3 + $0x158] sm:$0xff]
    %v1511 = vld [vmem:[%s3 + $0x160] sm:$0xff]
    %v1512 = vld [vmem:[%s3 + $0x168] sm:$0xff]
    %v1513 = vld [vmem:[%s3 + $0x170] sm:$0xff]
    %v1514 = vld [vmem:[%s3 + $0x178] sm:$0xff]
    %v1515 = vld [vmem:[%s3 + $0x180] sm:$0xff]
    %v1516 = vld [vmem:[%s3 + $0x188] sm:$0xff]
    %v1517 = vld [vmem:[%s3 + $0x190] sm:$0xff]
    %v1518 = vld [vmem:[%s3 + $0x198] sm:$0xff]
    %v1519 = vld [vmem:[%s3 + $0x1a0] sm:$0xff]
    %v1520 = vld [vmem:[%s3 + $0x1a8] sm:$0xff]
    %v1521 = vld [vmem:[%s3 + $0x1b0] sm:$0xff]
    %v1522 = vld [vmem:[%s3 + $0x1b8] sm:$0xff]
    %v1523 = vld [vmem:[%s3 + $0x1c0] sm:$0xff]
    %v1524 = vld [vmem:[%s3 + $0x1c8] sm:$0xff]
    %v1525 = vld [vmem:[%s3 + $0x1d0] sm:$0xff]
    %v1526 = vld [vmem:[%s3 + $0x1d8] sm:$0xff]
    %v1527 = vld [vmem:[%s3 + $0x1e0] sm:$0xff]
    %v1528 = vld [vmem:[%s3 + $0x1e8] sm:$0xff]
    %v1529 = vld [vmem:[%s3 + $0x1f0] sm:$0xff]
    %v1530 = vld [vmem:[%s3 + $0x1f8] sm:$0xff]
    %v1531 = vld [vmem:[%s3 + $0x200] sm:$0xff]
    %v1532 = vld [vmem:[%s3 + $0x208] sm:$0xff]
    %v1533 = vld [vmem:[%s3 + $0x210] sm:$0xff]
    %v1534 = vld [vmem:[%s3 + $0x218] sm:$0xff]
    %v1535 = vld [vmem:[%s3 + $0x220] sm:$0xff]
    %v1536 = vld [vmem:[%s3 + $0x228] sm:$0xff]
    %v1537 = vld [vmem:[%s3 + $0x230] sm:$0xff]
    %v1538 = vld [vmem:[%s3 + $0x238] sm:$0xff]
    %v1539 = vld [vmem:[%s3 + $0x240] sm:$0xff]
    %v1540 = vld [vmem:[%s3 + $0x248] sm:$0xff]
    %v1541 = vld [vmem:[%s3 + $0x250] sm:$0xff]
    %v1542 = vld [vmem:[%s3 + $0x258] sm:$0xff]
    %v1543 = vld [vmem:[%s3 + $0x260] sm:$0xff]
    %v1544 = vld [vmem:[%s3 + $0x268] sm:$0xff]
    %v1545 = vld [vmem:[%s3 + $0x270] sm:$0xff]
    %v1546 = vld [vmem:[%s3 + $0x278] sm:$0xff]
    %v1547 = vld [vmem:[%s3 + $0x280] sm:$0xff]
    %v1548 = vld [vmem:[%s3 + $0x288] sm:$0xff]
    %v1549 = vld [vmem:[%s3 + $0x290] sm:$0xff]
    %v1550 = vld [vmem:[%s3 + $0x298] sm:$0xff]
    %v1551 = vld [vmem:[%s3 + $0x2a0] sm:$0xff]
    %v1552 = vld [vmem:[%s3 + $0x2a8] sm:$0xff]
    %v1553 = vld [vmem:[%s3 + $0x2b0] sm:$0xff]
    %v1554 = vld [vmem:[%s3 + $0x2b8] sm:$0xff]
    %v1555 = vld [vmem:[%s3 + $0x2c0] sm:$0xff]
    %v1556 = vld [vmem:[%s3 + $0x2c8] sm:$0xff]
    %v1557 = vld [vmem:[%s3 + $0x2d0] sm:$0xff]
    %v1558 = vld [vmem:[%s3 + $0x2d8] sm:$0xff]
    %v1559 = vld [vmem:[%s3 + $0x2e0] sm:$0xff]
    %v1560 = vld [vmem:[%s3 + $0x2e8] sm:$0xff]
    %v1561 = vld [vmem:[%s3 + $0x2f0] sm:$0xff]
    %v1562 = vld [vmem:[%s3 + $0x2f8] sm:$0xff]
    %v1563 = vld [vmem:[%s3 + $0x300] sm:$0xff]
    %v1564 = vld [vmem:[%s3 + $0x308] sm:$0xff]
    %v1565 = vld [vmem:[%s3 + $0x310] sm:$0xff]
    %v1566 = vld [vmem:[%s3 + $0x318] sm:$0xff]
    %v1567 = vld [vmem:[%s3 + $0x320] sm:$0xff]
    %v1568 = vld [vmem:[%s3 + $0x328] sm:$0xff]
    %v1569 = vld [vmem:[%s3 + $0x330] sm:$0xff]
    %v1570 = vld [vmem:[%s3 + $0x338] sm:$0xff]
    %v1571 = vld [vmem:[%s3 + $0x340] sm:$0xff]
    %v1572 = vld [vmem:[%s3 + $0x348] sm:$0xff]
    %v1573 = vld [vmem:[%s3 + $0x350] sm:$0xff]
    %v1574 = vld [vmem:[%s3 + $0x358] sm:$0xff]
    %v1575 = vld [vmem:[%s3 + $0x360] sm:$0xff]
    %v1576 = vld [vmem:[%s3 + $0x368] sm:$0xff]
    %v1577 = vld [vmem:[%s3 + $0x370] sm:$0xff]
    %v1578 = vld [vmem:[%s3 + $0x378] sm:$0xff]
    %v1579 = vld [vmem:[%s3 + $0x380] sm:$0xff]
    %v1580 = vld [vmem:[%s3 + $0x388] sm:$0xff]
    %v1581 = vld [vmem:[%s3 + $0x390] sm:$0xff]
    %v1582 = vld [vmem:[%s3 + $0x398] sm:$0xff]
    %v1583 = vld [vmem:[%s3 + $0x3a0] sm:$0xff]
    %v1584 = vld [vmem:[%s3 + $0x3a8] sm:$0xff]
    %v1585 = vld [vmem:[%s3 + $0x3b0] sm:$0xff]
    %v1586 = vld [vmem:[%s3 + $0x3b8] sm:$0xff]
    %v1587 = vld [vmem:[%s3 + $0x3c0] sm:$0xff]
    %v1588 = vld [vmem:[%s3 + $0x3c8] sm:$0xff]
    %v1589 = vld [vmem:[%s3 + $0x3d0] sm:$0xff]
    %v1590 = vld [vmem:[%s3 + $0x3d8] sm:$0xff]
    %v1591 = vld [vmem:[%s3 + $0x3e0] sm:$0xff]
    %v1592 = vld [vmem:[%s3 + $0x3e8] sm:$0xff]
    %v1593 = vld [vmem:[%s3 + $0x3f0] sm:$0xff]
    %v1594 = vld [vmem:[%s3 + $0x3f8] sm:$0xff]
    %v1595 = vld [vmem:[%s4] sm:$0xf]
    %v1597 = vlaneseq
    %v1598 = vshrl.u32 %v1597, 7
    %v1599 = vsub.s32 0, %v1598
    %v1600 = vrot.slane %v1595, %v1599
    %v1601 = vlaneseq
    %v1602 = vshrl.u32 %v1601, 7
    %v1603 = vsub.s32 1, %v1602
    %v1604 = vrot.slane %v1595, %v1603
    %v1605 = vlaneseq
    %v1606 = vshrl.u32 %v1605, 7
    %v1607 = vsub.s32 2, %v1606
    %v1608 = vrot.slane %v1595, %v1607
    %v1609 = vlaneseq
    %v1610 = vshrl.u32 %v1609, 7
    %v1611 = vsub.s32 3, %v1610
    %v1612 = vrot.slane %v1595, %v1611
    %v1745 = vunpack.c.l.b16 %v1467
    %v1746 = vunpack.c.h.b16 %v1467
    %v1747 = vunpack.c.l.b16 %v1468
    %v1748 = vunpack.c.h.b16 %v1468
    %v1749 = vunpack.c.l.b16 %v1469
    %v1750 = vunpack.c.h.b16 %v1469
    %v1751 = vunpack.c.l.b16 %v1470
    %v1752 = vunpack.c.h.b16 %v1470
    %v1753 = vunpack.c.l.b16 %v1471
    %v1754 = vunpack.c.h.b16 %v1471
    %v1755 = vunpack.c.l.b16 %v1472
    %v1756 = vunpack.c.h.b16 %v1472
    %v1757 = vunpack.c.l.b16 %v1473
    %v1758 = vunpack.c.h.b16 %v1473
    %v1759 = vunpack.c.l.b16 %v1474
    %v1760 = vunpack.c.h.b16 %v1474
    %v1761 = vunpack.c.l.b16 %v1475
    %v1762 = vunpack.c.h.b16 %v1475
    %v1763 = vunpack.c.l.b16 %v1476
    %v1764 = vunpack.c.h.b16 %v1476
    %v1765 = vunpack.c.l.b16 %v1477
    %v1766 = vunpack.c.h.b16 %v1477
    %v1767 = vunpack.c.l.b16 %v1478
    %v1768 = vunpack.c.h.b16 %v1478
    %v1769 = vunpack.c.l.b16 %v1479
    %v1770 = vunpack.c.h.b16 %v1479
    %v1771 = vunpack.c.l.b16 %v1480
    %v1772 = vunpack.c.h.b16 %v1480
    %v1773 = vunpack.c.l.b16 %v1481
    %v1774 = vunpack.c.h.b16 %v1481
    %v1775 = vunpack.c.l.b16 %v1482
    %v1776 = vunpack.c.h.b16 %v1482
    %v1777 = vunpack.c.l.b16 %v1483
    %v1778 = vunpack.c.h.b16 %v1483
    %v1779 = vunpack.c.l.b16 %v1484
    %v1780 = vunpack.c.h.b16 %v1484
    %v1781 = vunpack.c.l.b16 %v1485
    %v1782 = vunpack.c.h.b16 %v1485
    %v1783 = vunpack.c.l.b16 %v1486
    %v1784 = vunpack.c.h.b16 %v1486
    %v1785 = vunpack.c.l.b16 %v1487
    %v1786 = vunpack.c.h.b16 %v1487
    %v1787 = vunpack.c.l.b16 %v1488
    %v1788 = vunpack.c.h.b16 %v1488
    %v1789 = vunpack.c.l.b16 %v1489
    %v1790 = vunpack.c.h.b16 %v1489
    %v1791 = vunpack.c.l.b16 %v1490
    %v1792 = vunpack.c.h.b16 %v1490
    %v1793 = vunpack.c.l.b16 %v1491
    %v1794 = vunpack.c.h.b16 %v1491
    %v1795 = vunpack.c.l.b16 %v1492
    %v1796 = vunpack.c.h.b16 %v1492
    %v1797 = vunpack.c.l.b16 %v1493
    %v1798 = vunpack.c.h.b16 %v1493
    %v1799 = vunpack.c.l.b16 %v1494
    %v1800 = vunpack.c.h.b16 %v1494
    %v1801 = vunpack.c.l.b16 %v1495
    %v1802 = vunpack.c.h.b16 %v1495
    %v1803 = vunpack.c.l.b16 %v1496
    %v1804 = vunpack.c.h.b16 %v1496
    %v1805 = vunpack.c.l.b16 %v1497
    %v1806 = vunpack.c.h.b16 %v1497
    %v1807 = vunpack.c.l.b16 %v1498
    %v1808 = vunpack.c.h.b16 %v1498
    %v1809 = vunpack.c.l.b16 %v1499
    %v1810 = vunpack.c.h.b16 %v1499
    %v1811 = vunpack.c.l.b16 %v1500
    %v1812 = vunpack.c.h.b16 %v1500
    %v1813 = vunpack.c.l.b16 %v1501
    %v1814 = vunpack.c.h.b16 %v1501
    %v1815 = vunpack.c.l.b16 %v1502
    %v1816 = vunpack.c.h.b16 %v1502
    %v1817 = vunpack.c.l.b16 %v1503
    %v1818 = vunpack.c.h.b16 %v1503
    %v1819 = vunpack.c.l.b16 %v1504
    %v1820 = vunpack.c.h.b16 %v1504
    %v1821 = vunpack.c.l.b16 %v1505
    %v1822 = vunpack.c.h.b16 %v1505
    %v1823 = vunpack.c.l.b16 %v1506
    %v1824 = vunpack.c.h.b16 %v1506
    %v1825 = vunpack.c.l.b16 %v1507
    %v1826 = vunpack.c.h.b16 %v1507
    %v1827 = vunpack.c.l.b16 %v1508
    %v1828 = vunpack.c.h.b16 %v1508
    %v1829 = vunpack.c.l.b16 %v1509
    %v1830 = vunpack.c.h.b16 %v1509
    %v1831 = vunpack.c.l.b16 %v1510
    %v1832 = vunpack.c.h.b16 %v1510
    %v1833 = vunpack.c.l.b16 %v1511
    %v1834 = vunpack.c.h.b16 %v1511
    %v1835 = vunpack.c.l.b16 %v1512
    %v1836 = vunpack.c.h.b16 %v1512
    %v1837 = vunpack.c.l.b16 %v1513
    %v1838 = vunpack.c.h.b16 %v1513
    %v1839 = vunpack.c.l.b16 %v1514
    %v1840 = vunpack.c.h.b16 %v1514
    %v1841 = vunpack.c.l.b16 %v1515
    %v1842 = vunpack.c.h.b16 %v1515
    %v1843 = vunpack.c.l.b16 %v1516
    %v1844 = vunpack.c.h.b16 %v1516
    %v1845 = vunpack.c.l.b16 %v1517
    %v1846 = vunpack.c.h.b16 %v1517
    %v1847 = vunpack.c.l.b16 %v1518
    %v1848 = vunpack.c.h.b16 %v1518
    %v1849 = vunpack.c.l.b16 %v1519
    %v1850 = vunpack.c.h.b16 %v1519
    %v1851 = vunpack.c.l.b16 %v1520
    %v1852 = vunpack.c.h.b16 %v1520
    %v1853 = vunpack.c.l.b16 %v1521
    %v1854 = vunpack.c.h.b16 %v1521
    %v1855 = vunpack.c.l.b16 %v1522
    %v1856 = vunpack.c.h.b16 %v1522
    %v1857 = vunpack.c.l.b16 %v1523
    %v1858 = vunpack.c.h.b16 %v1523
    %v1859 = vunpack.c.l.b16 %v1524
    %v1860 = vunpack.c.h.b16 %v1524
    %v1861 = vunpack.c.l.b16 %v1525
    %v1862 = vunpack.c.h.b16 %v1525
    %v1863 = vunpack.c.l.b16 %v1526
    %v1864 = vunpack.c.h.b16 %v1526
    %v1865 = vunpack.c.l.b16 %v1527
    %v1866 = vunpack.c.h.b16 %v1527
    %v1867 = vunpack.c.l.b16 %v1528
    %v1868 = vunpack.c.h.b16 %v1528
    %v1869 = vunpack.c.l.b16 %v1529
    %v1870 = vunpack.c.h.b16 %v1529
    %v1871 = vunpack.c.l.b16 %v1530
    %v1872 = vunpack.c.h.b16 %v1530
    %v1873 = vunpack.c.l.b16 %v1531
    %v1874 = vunpack.c.h.b16 %v1531
    %v1875 = vunpack.c.l.b16 %v1532
    %v1876 = vunpack.c.h.b16 %v1532
    %v1877 = vunpack.c.l.b16 %v1533
    %v1878 = vunpack.c.h.b16 %v1533
    %v1879 = vunpack.c.l.b16 %v1534
    %v1880 = vunpack.c.h.b16 %v1534
    %v1881 = vunpack.c.l.b16 %v1535
    %v1882 = vunpack.c.h.b16 %v1535
    %v1883 = vunpack.c.l.b16 %v1536
    %v1884 = vunpack.c.h.b16 %v1536
    %v1885 = vunpack.c.l.b16 %v1537
    %v1886 = vunpack.c.h.b16 %v1537
    %v1887 = vunpack.c.l.b16 %v1538
    %v1888 = vunpack.c.h.b16 %v1538
    %v1889 = vunpack.c.l.b16 %v1539
    %v1890 = vunpack.c.h.b16 %v1539
    %v1891 = vunpack.c.l.b16 %v1540
    %v1892 = vunpack.c.h.b16 %v1540
    %v1893 = vunpack.c.l.b16 %v1541
    %v1894 = vunpack.c.h.b16 %v1541
    %v1895 = vunpack.c.l.b16 %v1542
    %v1896 = vunpack.c.h.b16 %v1542
    %v1897 = vunpack.c.l.b16 %v1543
    %v1898 = vunpack.c.h.b16 %v1543
    %v1899 = vunpack.c.l.b16 %v1544
    %v1900 = vunpack.c.h.b16 %v1544
    %v1901 = vunpack.c.l.b16 %v1545
    %v1902 = vunpack.c.h.b16 %v1545
    %v1903 = vunpack.c.l.b16 %v1546
    %v1904 = vunpack.c.h.b16 %v1546
    %v1905 = vunpack.c.l.b16 %v1547
    %v1906 = vunpack.c.h.b16 %v1547
    %v1907 = vunpack.c.l.b16 %v1548
    %v1908 = vunpack.c.h.b16 %v1548
    %v1909 = vunpack.c.l.b16 %v1549
    %v1910 = vunpack.c.h.b16 %v1549
    %v1911 = vunpack.c.l.b16 %v1550
    %v1912 = vunpack.c.h.b16 %v1550
    %v1913 = vunpack.c.l.b16 %v1551
    %v1914 = vunpack.c.h.b16 %v1551
    %v1915 = vunpack.c.l.b16 %v1552
    %v1916 = vunpack.c.h.b16 %v1552
    %v1917 = vunpack.c.l.b16 %v1553
    %v1918 = vunpack.c.h.b16 %v1553
    %v1919 = vunpack.c.l.b16 %v1554
    %v1920 = vunpack.c.h.b16 %v1554
    %v1921 = vunpack.c.l.b16 %v1555
    %v1922 = vunpack.c.h.b16 %v1555
    %v1923 = vunpack.c.l.b16 %v1556
    %v1924 = vunpack.c.h.b16 %v1556
    %v1925 = vunpack.c.l.b16 %v1557
    %v1926 = vunpack.c.h.b16 %v1557
    %v1927 = vunpack.c.l.b16 %v1558
    %v1928 = vunpack.c.h.b16 %v1558
    %v1929 = vunpack.c.l.b16 %v1559
    %v1930 = vunpack.c.h.b16 %v1559
    %v1931 = vunpack.c.l.b16 %v1560
    %v1932 = vunpack.c.h.b16 %v1560
    %v1933 = vunpack.c.l.b16 %v1561
    %v1934 = vunpack.c.h.b16 %v1561
    %v1935 = vunpack.c.l.b16 %v1562
    %v1936 = vunpack.c.h.b16 %v1562
    %v1937 = vunpack.c.l.b16 %v1563
    %v1938 = vunpack.c.h.b16 %v1563
    %v1939 = vunpack.c.l.b16 %v1564
    %v1940 = vunpack.c.h.b16 %v1564
    %v1941 = vunpack.c.l.b16 %v1565
    %v1942 = vunpack.c.h.b16 %v1565
    %v1943 = vunpack.c.l.b16 %v1566
    %v1944 = vunpack.c.h.b16 %v1566
    %v1945 = vunpack.c.l.b16 %v1567
    %v1946 = vunpack.c.h.b16 %v1567
    %v1947 = vunpack.c.l.b16 %v1568
    %v1948 = vunpack.c.h.b16 %v1568
    %v1949 = vunpack.c.l.b16 %v1569
    %v1950 = vunpack.c.h.b16 %v1569
    %v1951 = vunpack.c.l.b16 %v1570
    %v1952 = vunpack.c.h.b16 %v1570
    %v1953 = vunpack.c.l.b16 %v1571
    %v1954 = vunpack.c.h.b16 %v1571
    %v1955 = vunpack.c.l.b16 %v1572
    %v1956 = vunpack.c.h.b16 %v1572
    %v1957 = vunpack.c.l.b16 %v1573
    %v1958 = vunpack.c.h.b16 %v1573
    %v1959 = vunpack.c.l.b16 %v1574
    %v1960 = vunpack.c.h.b16 %v1574
    %v1961 = vunpack.c.l.b16 %v1575
    %v1962 = vunpack.c.h.b16 %v1575
    %v1963 = vunpack.c.l.b16 %v1576
    %v1964 = vunpack.c.h.b16 %v1576
    %v1965 = vunpack.c.l.b16 %v1577
    %v1966 = vunpack.c.h.b16 %v1577
    %v1967 = vunpack.c.l.b16 %v1578
    %v1968 = vunpack.c.h.b16 %v1578
    %v1969 = vunpack.c.l.b16 %v1579
    %v1970 = vunpack.c.h.b16 %v1579
    %v1971 = vunpack.c.l.b16 %v1580
    %v1972 = vunpack.c.h.b16 %v1580
    %v1973 = vunpack.c.l.b16 %v1581
    %v1974 = vunpack.c.h.b16 %v1581
    %v1975 = vunpack.c.l.b16 %v1582
    %v1976 = vunpack.c.h.b16 %v1582
    %v1977 = vunpack.c.l.b16 %v1583
    %v1978 = vunpack.c.h.b16 %v1583
    %v1979 = vunpack.c.l.b16 %v1584
    %v1980 = vunpack.c.h.b16 %v1584
    %v1981 = vunpack.c.l.b16 %v1585
    %v1982 = vunpack.c.h.b16 %v1585
    %v1983 = vunpack.c.l.b16 %v1586
    %v1984 = vunpack.c.h.b16 %v1586
    %v1985 = vunpack.c.l.b16 %v1587
    %v1986 = vunpack.c.h.b16 %v1587
    %v1987 = vunpack.c.l.b16 %v1588
    %v1988 = vunpack.c.h.b16 %v1588
    %v1989 = vunpack.c.l.b16 %v1589
    %v1990 = vunpack.c.h.b16 %v1589
    %v1991 = vunpack.c.l.b16 %v1590
    %v1992 = vunpack.c.h.b16 %v1590
    %v1993 = vunpack.c.l.b16 %v1591
    %v1994 = vunpack.c.h.b16 %v1591
    %v1995 = vunpack.c.l.b16 %v1592
    %v1996 = vunpack.c.h.b16 %v1592
    %v1997 = vunpack.c.l.b16 %v1593
    %v1998 = vunpack.c.h.b16 %v1593
    %v1999 = vunpack.c.l.b16 %v1594
    %v2000 = vunpack.c.h.b16 %v1594
    %v2001 = vpack.c.b16 %v1749, %v1745
    %v2002 = vpack.c.b16 %v1750, %v1746
    %v2003 = vpack.c.b16 %v1751, %v1747
    %v2004 = vpack.c.b16 %v1752, %v1748
    %v2005 = vpack.c.b16 %v1757, %v1753
    %v2006 = vpack.c.b16 %v1758, %v1754
    %v2007 = vpack.c.b16 %v1759, %v1755
    %v2008 = vpack.c.b16 %v1760, %v1756
    %v2009 = vpack.c.b16 %v1765, %v1761
    %v2010 = vpack.c.b16 %v1766, %v1762
    %v2011 = vpack.c.b16 %v1767, %v1763
    %v2012 = vpack.c.b16 %v1768, %v1764
    %v2013 = vpack.c.b16 %v1773, %v1769
    %v2014 = vpack.c.b16 %v1774, %v1770
    %v2015 = vpack.c.b16 %v1775, %v1771
    %v2016 = vpack.c.b16 %v1776, %v1772
    %v2017 = vpack.c.b16 %v1781, %v1777
    %v2018 = vpack.c.b16 %v1782, %v1778
    %v2019 = vpack.c.b16 %v1783, %v1779
    %v2020 = vpack.c.b16 %v1784, %v1780
    %v2021 = vpack.c.b16 %v1789, %v1785
    %v2022 = vpack.c.b16 %v1790, %v1786
    %v2023 = vpack.c.b16 %v1791, %v1787
    %v2024 = vpack.c.b16 %v1792, %v1788
    %v2025 = vpack.c.b16 %v1797, %v1793
    %v2026 = vpack.c.b16 %v1798, %v1794
    %v2027 = vpack.c.b16 %v1799, %v1795
    %v2028 = vpack.c.b16 %v1800, %v1796
    %v2029 = vpack.c.b16 %v1805, %v1801
    %v2030 = vpack.c.b16 %v1806, %v1802
    %v2031 = vpack.c.b16 %v1807, %v1803
    %v2032 = vpack.c.b16 %v1808, %v1804
    %v2033 = vpack.c.b16 %v1813, %v1809
    %v2034 = vpack.c.b16 %v1814, %v1810
    %v2035 = vpack.c.b16 %v1815, %v1811
    %v2036 = vpack.c.b16 %v1816, %v1812
    %v2037 = vpack.c.b16 %v1821, %v1817
    %v2038 = vpack.c.b16 %v1822, %v1818
    %v2039 = vpack.c.b16 %v1823, %v1819
    %v2040 = vpack.c.b16 %v1824, %v1820
    %v2041 = vpack.c.b16 %v1829, %v1825
    %v2042 = vpack.c.b16 %v1830, %v1826
    %v2043 = vpack.c.b16 %v1831, %v1827
    %v2044 = vpack.c.b16 %v1832, %v1828
    %v2045 = vpack.c.b16 %v1837, %v1833
    %v2046 = vpack.c.b16 %v1838, %v1834
    %v2047 = vpack.c.b16 %v1839, %v1835
    %v2048 = vpack.c.b16 %v1840, %v1836
    %v2049 = vpack.c.b16 %v1845, %v1841
    %v2050 = vpack.c.b16 %v1846, %v1842
    %v2051 = vpack.c.b16 %v1847, %v1843
    %v2052 = vpack.c.b16 %v1848, %v1844
    %v2053 = vpack.c.b16 %v1853, %v1849
    %v2054 = vpack.c.b16 %v1854, %v1850
    %v2055 = vpack.c.b16 %v1855, %v1851
    %v2056 = vpack.c.b16 %v1856, %v1852
    %v2057 = vpack.c.b16 %v1861, %v1857
    %v2058 = vpack.c.b16 %v1862, %v1858
    %v2059 = vpack.c.b16 %v1863, %v1859
    %v2060 = vpack.c.b16 %v1864, %v1860
    %v2061 = vpack.c.b16 %v1869, %v1865
    %v2062 = vpack.c.b16 %v1870, %v1866
    %v2063 = vpack.c.b16 %v1871, %v1867
    %v2064 = vpack.c.b16 %v1872, %v1868
    %v2065 = vpack.c.b16 %v1877, %v1873
    %v2066 = vpack.c.b16 %v1878, %v1874
    %v2067 = vpack.c.b16 %v1879, %v1875
    %v2068 = vpack.c.b16 %v1880, %v1876
    %v2069 = vpack.c.b16 %v1885, %v1881
    %v2070 = vpack.c.b16 %v1886, %v1882
    %v2071 = vpack.c.b16 %v1887, %v1883
    %v2072 = vpack.c.b16 %v1888, %v1884
    %v2073 = vpack.c.b16 %v1893, %v1889
    %v2074 = vpack.c.b16 %v1894, %v1890
    %v2075 = vpack.c.b16 %v1895, %v1891
    %v2076 = vpack.c.b16 %v1896, %v1892
    %v2077 = vpack.c.b16 %v1901, %v1897
    %v2078 = vpack.c.b16 %v1902, %v1898
    %v2079 = vpack.c.b16 %v1903, %v1899
    %v2080 = vpack.c.b16 %v1904, %v1900
    %v2081 = vpack.c.b16 %v1909, %v1905
    %v2082 = vpack.c.b16 %v1910, %v1906
    %v2083 = vpack.c.b16 %v1911, %v1907
    %v2084 = vpack.c.b16 %v1912, %v1908
    %v2085 = vpack.c.b16 %v1917, %v1913
    %v2086 = vpack.c.b16 %v1918, %v1914
    %v2087 = vpack.c.b16 %v1919, %v1915
    %v2088 = vpack.c.b16 %v1920, %v1916
    %v2089 = vpack.c.b16 %v1925, %v1921
    %v2090 = vpack.c.b16 %v1926, %v1922
    %v2091 = vpack.c.b16 %v1927, %v1923
    %v2092 = vpack.c.b16 %v1928, %v1924
    %v2093 = vpack.c.b16 %v1933, %v1929
    %v2094 = vpack.c.b16 %v1934, %v1930
    %v2095 = vpack.c.b16 %v1935, %v1931
    %v2096 = vpack.c.b16 %v1936, %v1932
    %v2097 = vpack.c.b16 %v1941, %v1937
    %v2098 = vpack.c.b16 %v1942, %v1938
    %v2099 = vpack.c.b16 %v1943, %v1939
    %v2100 = vpack.c.b16 %v1944, %v1940
    %v2101 = vpack.c.b16 %v1949, %v1945
    %v2102 = vpack.c.b16 %v1950, %v1946
    %v2103 = vpack.c.b16 %v1951, %v1947
    %v2104 = vpack.c.b16 %v1952, %v1948
    %v2105 = vpack.c.b16 %v1957, %v1953
    %v2106 = vpack.c.b16 %v1958, %v1954
    %v2107 = vpack.c.b16 %v1959, %v1955
    %v2108 = vpack.c.b16 %v1960, %v1956
    %v2109 = vpack.c.b16 %v1965, %v1961
    %v2110 = vpack.c.b16 %v1966, %v1962
    %v2111 = vpack.c.b16 %v1967, %v1963
    %v2112 = vpack.c.b16 %v1968, %v1964
    %v2113 = vpack.c.b16 %v1973, %v1969
    %v2114 = vpack.c.b16 %v1974, %v1970
    %v2115 = vpack.c.b16 %v1975, %v1971
    %v2116 = vpack.c.b16 %v1976, %v1972
    %v2117 = vpack.c.b16 %v1981, %v1977
    %v2118 = vpack.c.b16 %v1982, %v1978
    %v2119 = vpack.c.b16 %v1983, %v1979
    %v2120 = vpack.c.b16 %v1984, %v1980
    %v2121 = vpack.c.b16 %v1989, %v1985
    %v2122 = vpack.c.b16 %v1990, %v1986
    %v2123 = vpack.c.b16 %v1991, %v1987
    %v2124 = vpack.c.b16 %v1992, %v1988
    %v2125 = vpack.c.b16 %v1997, %v1993
    %v2126 = vpack.c.b16 %v1998, %v1994
    %v2127 = vpack.c.b16 %v1999, %v1995
    %v2128 = vpack.c.b16 %v2000, %v1996
    %2257 = vmatprep.subr.bf16.mxu0 %v2030
    %2258 = vmatpush1.bf16.msra.mxu0 %v2029
    %2259 = vmatprep.subr.bf16.mxu0 %v2026
    %2260 = vmatpush1.bf16.msra.mxu0 %v2025
    %2261 = vmatprep.subr.bf16.mxu0 %v2022
    %2262 = vmatpush1.bf16.msra.mxu0 %v2021
    %2263 = vmatprep.subr.bf16.mxu0 %v2018
    %2264 = vmatpush1.bf16.msra.mxu0 %v2017
    %2265 = vmatprep.subr.bf16.mxu0 %v2014
    %2266 = vmatpush1.bf16.msra.mxu0 %v2013
    %2267 = vmatprep.subr.bf16.mxu0 %v2010
    %2268 = vmatpush1.bf16.msra.mxu0 %v2009
    %2269 = vmatprep.subr.bf16.mxu0 %v2006
    %2270 = vmatpush1.bf16.msra.mxu0 %v2005
    %2271 = vmatprep.subr.bf16.mxu0 %v2002
    %2272 = vmatpush1.bf16.msra.mxu0 %v2001
    %2273 = vmatprep.subr.bf16.mxu0 %v2062
    %2274 = vmatpush2.bf16.msra.mxu0 %v2061
    %2275 = vmatprep.subr.bf16.mxu0 %v2058
    %2276 = vmatpush2.bf16.msra.mxu0 %v2057
    %2277 = vmatprep.subr.bf16.mxu0 %v2054
    %2278 = vmatpush2.bf16.msra.mxu0 %v2053
    %2279 = vmatprep.subr.bf16.mxu0 %v2050
    %2280 = vmatpush2.bf16.msra.mxu0 %v2049
    %2281 = vmatprep.subr.bf16.mxu0 %v2046
    %2282 = vmatpush2.bf16.msra.mxu0 %v2045
    %2283 = vmatprep.subr.bf16.mxu0 %v2042
    %2284 = vmatpush2.bf16.msra.mxu0 %v2041
    %2285 = vmatprep.subr.bf16.mxu0 %v2038
    %2286 = vmatpush2.bf16.msra.mxu0 %v2037
    %2287 = vmatprep.subr.bf16.mxu0 %v2034
    %2288 = vmatpush2.bf16.msra.mxu0 %v2033
    %2289 = vmatprep.mubr.bf16.mxu0 %v1464
    %2290 = vmatmul.mubr.bf16.gmra.mxu0 %v1463
    %v2291 = vpop.f32.mrf.mxu0
    %v2292 = vadd.f32 %v1600, %v2291
    %v2293 = vpop.f32.mrf.mxu0
    %v2294 = vadd.f32 %v1604, %v2293
    %v2295 = vpop.f32.mrf.mxu0
    %v2296 = vpop.f32.mrf.mxu0
    %2297 = vdwg.mxu0
    %2298 = vmatprep.subr.bf16.mxu0 %v2094
    %2299 = vmatpush1.bf16.msra.mxu0 %v2093
    %2300 = vmatprep.subr.bf16.mxu0 %v2090
    %2301 = vmatpush1.bf16.msra.mxu0 %v2089
    %2302 = vmatprep.subr.bf16.mxu0 %v2086
    %2303 = vmatpush1.bf16.msra.mxu0 %v2085
    %2304 = vmatprep.subr.bf16.mxu0 %v2082
    %2305 = vmatpush1.bf16.msra.mxu0 %v2081
    %2306 = vmatprep.subr.bf16.mxu0 %v2078
    %2307 = vmatpush1.bf16.msra.mxu0 %v2077
    %2308 = vmatprep.subr.bf16.mxu0 %v2074
    %2309 = vmatpush1.bf16.msra.mxu0 %v2073
    %2310 = vmatprep.subr.bf16.mxu0 %v2070
    %2311 = vmatpush1.bf16.msra.mxu0 %v2069
    %2312 = vmatprep.subr.bf16.mxu0 %v2066
    %2313 = vmatpush1.bf16.msra.mxu0 %v2065
    %2314 = vmatprep.subr.bf16.mxu0 %v2126
    %2315 = vmatpush2.bf16.msra.mxu0 %v2125
    %2316 = vmatprep.subr.bf16.mxu0 %v2122
    %2317 = vmatpush2.bf16.msra.mxu0 %v2121
    %2318 = vmatprep.subr.bf16.mxu0 %v2118
    %2319 = vmatpush2.bf16.msra.mxu0 %v2117
    %2320 = vmatprep.subr.bf16.mxu0 %v2114
    %2321 = vmatpush2.bf16.msra.mxu0 %v2113
    %2322 = vmatprep.subr.bf16.mxu0 %v2110
    %2323 = vmatpush2.bf16.msra.mxu0 %v2109
    %2324 = vmatprep.subr.bf16.mxu0 %v2106
    %2325 = vmatpush2.bf16.msra.mxu0 %v2105
    %2326 = vmatprep.subr.bf16.mxu0 %v2102
    %2327 = vmatpush2.bf16.msra.mxu0 %v2101
    %2328 = vmatprep.subr.bf16.mxu0 %v2098
    %2329 = vmatpush2.bf16.msra.mxu0 %v2097
    %2330 = vmatprep.mubr.bf16.mxu0 %v1466
    %2331 = vmatmul.mubr.bf16.gmra.mxu0 %v1465
    %v2332 = vpop.f32.mrf.mxu0
    %v2333 = vadd.f32 %v2292, %v2332
    %v2334 = vpop.f32.mrf.mxu0
    %v2335 = vadd.f32 %v2294, %v2334
    %v2336 = vpop.f32.mrf.mxu0
    %v2337 = vpop.f32.mrf.mxu0
    %2338 = vdwg.mxu0
    %2339 = vmatprep.subr.bf16.mxu0 %v2032
    %2340 = vmatpush1.bf16.msra.mxu0 %v2031
    %2341 = vmatprep.subr.bf16.mxu0 %v2028
    %2342 = vmatpush1.bf16.msra.mxu0 %v2027
    %2343 = vmatprep.subr.bf16.mxu0 %v2024
    %2344 = vmatpush1.bf16.msra.mxu0 %v2023
    %2345 = vmatprep.subr.bf16.mxu0 %v2020
    %2346 = vmatpush1.bf16.msra.mxu0 %v2019
    %2347 = vmatprep.subr.bf16.mxu0 %v2016
    %2348 = vmatpush1.bf16.msra.mxu0 %v2015
    %2349 = vmatprep.subr.bf16.mxu0 %v2012
    %2350 = vmatpush1.bf16.msra.mxu0 %v2011
    %2351 = vmatprep.subr.bf16.mxu0 %v2008
    %2352 = vmatpush1.bf16.msra.mxu0 %v2007
    %2353 = vmatprep.subr.bf16.mxu0 %v2004
    %2354 = vmatpush1.bf16.msra.mxu0 %v2003
    %2355 = vmatprep.subr.bf16.mxu0 %v2064
    %2356 = vmatpush2.bf16.msra.mxu0 %v2063
    %2357 = vmatprep.subr.bf16.mxu0 %v2060
    %2358 = vmatpush2.bf16.msra.mxu0 %v2059
    %2359 = vmatprep.subr.bf16.mxu0 %v2056
    %2360 = vmatpush2.bf16.msra.mxu0 %v2055
    %2361 = vmatprep.subr.bf16.mxu0 %v2052
    %2362 = vmatpush2.bf16.msra.mxu0 %v2051
    %2363 = vmatprep.subr.bf16.mxu0 %v2048
    %2364 = vmatpush2.bf16.msra.mxu0 %v2047
    %2365 = vmatprep.subr.bf16.mxu0 %v2044
    %2366 = vmatpush2.bf16.msra.mxu0 %v2043
    %2367 = vmatprep.subr.bf16.mxu0 %v2040
    %2368 = vmatpush2.bf16.msra.mxu0 %v2039
    %2369 = vmatprep.subr.bf16.mxu0 %v2036
    %2370 = vmatpush2.bf16.msra.mxu0 %v2035
    %2371 = vmatprep.mubr.bf16.mxu0 %v1464
    %2372 = vmatmul.mubr.bf16.gmra.mxu0 %v1463
    %v2373 = vpop.f32.mrf.mxu0
    %v2374 = vadd.f32 %v1608, %v2373
    %v2375 = vpop.f32.mrf.mxu0
    %v2376 = vadd.f32 %v1612, %v2375
    %v2377 = vpop.f32.mrf.mxu0
    %v2378 = vpop.f32.mrf.mxu0
    %2379 = vdwg.mxu0
    %2380 = vmatprep.subr.bf16.mxu0 %v2096
    %2381 = vmatpush1.bf16.msra.mxu0 %v2095
    %2382 = vmatprep.subr.bf16.mxu0 %v2092
    %2383 = vmatpush1.bf16.msra.mxu0 %v2091
    %2384 = vmatprep.subr.bf16.mxu0 %v2088
    %2385 = vmatpush1.bf16.msra.mxu0 %v2087
    %2386 = vmatprep.subr.bf16.mxu0 %v2084
    %2387 = vmatpush1.bf16.msra.mxu0 %v2083
    %2388 = vmatprep.subr.bf16.mxu0 %v2080
    %2389 = vmatpush1.bf16.msra.mxu0 %v2079
    %2390 = vmatprep.subr.bf16.mxu0 %v2076
    %2391 = vmatpush1.bf16.msra.mxu0 %v2075
    %2392 = vmatprep.subr.bf16.mxu0 %v2072
    %2393 = vmatpush1.bf16.msra.mxu0 %v2071
    %2394 = vmatprep.subr.bf16.mxu0 %v2068
    %2395 = vmatpush1.bf16.msra.mxu0 %v2067
    %2396 = vmatprep.subr.bf16.mxu0 %v2128
    %2397 = vmatpush2.bf16.msra.mxu0 %v2127
    %2398 = vmatprep.subr.bf16.mxu0 %v2124
    %2399 = vmatpush2.bf16.msra.mxu0 %v2123
    %2400 = vmatprep.subr.bf16.mxu0 %v2120
    %2401 = vmatpush2.bf16.msra.mxu0 %v2119
    %2402 = vmatprep.subr.bf16.mxu0 %v2116
    %2403 = vmatpush2.bf16.msra.mxu0 %v2115
    %2404 = vmatprep.subr.bf16.mxu0 %v2112
    %2405 = vmatpush2.bf16.msra.mxu0 %v2111
    %2406 = vmatprep.subr.bf16.mxu0 %v2108
    %2407 = vmatpush2.bf16.msra.mxu0 %v2107
    %2408 = vmatprep.subr.bf16.mxu0 %v2104
    %2409 = vmatpush2.bf16.msra.mxu0 %v2103
    %2410 = vmatprep.subr.bf16.mxu0 %v2100
    %2411 = vmatpush2.bf16.msra.mxu0 %v2099
    %2412 = vmatprep.mubr.bf16.mxu0 %v1466
    %2413 = vmatmul.mubr.bf16.gmra.mxu0 %v1465
    %v2414 = vpop.f32.mrf.mxu0
    %v2415 = vadd.f32 %v2374, %v2414
    %v2416 = vpop.f32.mrf.mxu0
    %v2417 = vadd.f32 %v2376, %v2416
    %v2418 = vpop.f32.mrf.mxu0
    %v2419 = vpop.f32.mrf.mxu0
    %2420 = vdwg.mxu0
    %v2421 = vmax.f32 %v2333, 0.0
    %v2422 = vmax.f32 %v2335, 0.0
    %v2423 = vmax.f32 %v2415, 0.0
    %v2424 = vmax.f32 %v2417, 0.0
    %v2425 = vpack.c.bf16 %v2421, %v2421
    %v2426 = vpack.c.bf16 %v2422, %v2422
    %v2427 = vpack.c.bf16 %v2423, %v2423
    %v2428 = vpack.c.bf16 %v2424, %v2424
    %v2429 = vld [vmem:[%s5] sm:$0xff]
    %v2430 = vld [vmem:[%s5 + $0x8] sm:$0xff]
    %v2431 = vld [vmem:[%s5 + $0x10] sm:$0xff]
    %v2432 = vld [vmem:[%s5 + $0x18] sm:$0xff]
    %v2433 = vld [vmem:[%s5 + $0x20] sm:$0xff]
    %v2434 = vld [vmem:[%s5 + $0x28] sm:$0xff]
    %v2435 = vld [vmem:[%s5 + $0x30] sm:$0xff]
    %v2436 = vld [vmem:[%s5 + $0x38] sm:$0xff]
    %v2437 = vld [vmem:[%s5 + $0x40] sm:$0xff]
    %v2438 = vld [vmem:[%s5 + $0x48] sm:$0xff]
    %v2439 = vld [vmem:[%s5 + $0x50] sm:$0xff]
    %v2440 = vld [vmem:[%s5 + $0x58] sm:$0xff]
    %v2441 = vld [vmem:[%s5 + $0x60] sm:$0xff]
    %v2442 = vld [vmem:[%s5 + $0x68] sm:$0xff]
    %v2443 = vld [vmem:[%s5 + $0x70] sm:$0xff]
    %v2444 = vld [vmem:[%s5 + $0x78] sm:$0xff]
    %v2445 = vld [vmem:[%s5 + $0x80] sm:$0xff]
    %v2446 = vld [vmem:[%s5 + $0x88] sm:$0xff]
    %v2447 = vld [vmem:[%s5 + $0x90] sm:$0xff]
    %v2448 = vld [vmem:[%s5 + $0x98] sm:$0xff]
    %v2449 = vld [vmem:[%s5 + $0xa0] sm:$0xff]
    %v2450 = vld [vmem:[%s5 + $0xa8] sm:$0xff]
    %v2451 = vld [vmem:[%s5 + $0xb0] sm:$0xff]
    %v2452 = vld [vmem:[%s5 + $0xb8] sm:$0xff]
    %v2453 = vld [vmem:[%s5 + $0xc0] sm:$0xff]
    %v2454 = vld [vmem:[%s5 + $0xc8] sm:$0xff]
    %v2455 = vld [vmem:[%s5 + $0xd0] sm:$0xff]
    %v2456 = vld [vmem:[%s5 + $0xd8] sm:$0xff]
    %v2457 = vld [vmem:[%s5 + $0xe0] sm:$0xff]
    %v2458 = vld [vmem:[%s5 + $0xe8] sm:$0xff]
    %v2459 = vld [vmem:[%s5 + $0xf0] sm:$0xff]
    %v2460 = vld [vmem:[%s5 + $0xf8] sm:$0xff]
    %v2461 = vld [vmem:[%s5 + $0x100] sm:$0xff]
    %v2462 = vld [vmem:[%s5 + $0x108] sm:$0xff]
    %v2463 = vld [vmem:[%s5 + $0x110] sm:$0xff]
    %v2464 = vld [vmem:[%s5 + $0x118] sm:$0xff]
    %v2465 = vld [vmem:[%s5 + $0x120] sm:$0xff]
    %v2466 = vld [vmem:[%s5 + $0x128] sm:$0xff]
    %v2467 = vld [vmem:[%s5 + $0x130] sm:$0xff]
    %v2468 = vld [vmem:[%s5 + $0x138] sm:$0xff]
    %v2469 = vld [vmem:[%s5 + $0x140] sm:$0xff]
    %v2470 = vld [vmem:[%s5 + $0x148] sm:$0xff]
    %v2471 = vld [vmem:[%s5 + $0x150] sm:$0xff]
    %v2472 = vld [vmem:[%s5 + $0x158] sm:$0xff]
    %v2473 = vld [vmem:[%s5 + $0x160] sm:$0xff]
    %v2474 = vld [vmem:[%s5 + $0x168] sm:$0xff]
    %v2475 = vld [vmem:[%s5 + $0x170] sm:$0xff]
    %v2476 = vld [vmem:[%s5 + $0x178] sm:$0xff]
    %v2477 = vld [vmem:[%s5 + $0x180] sm:$0xff]
    %v2478 = vld [vmem:[%s5 + $0x188] sm:$0xff]
    %v2479 = vld [vmem:[%s5 + $0x190] sm:$0xff]
    %v2480 = vld [vmem:[%s5 + $0x198] sm:$0xff]
    %v2481 = vld [vmem:[%s5 + $0x1a0] sm:$0xff]
    %v2482 = vld [vmem:[%s5 + $0x1a8] sm:$0xff]
    %v2483 = vld [vmem:[%s5 + $0x1b0] sm:$0xff]
    %v2484 = vld [vmem:[%s5 + $0x1b8] sm:$0xff]
    %v2485 = vld [vmem:[%s5 + $0x1c0] sm:$0xff]
    %v2486 = vld [vmem:[%s5 + $0x1c8] sm:$0xff]
    %v2487 = vld [vmem:[%s5 + $0x1d0] sm:$0xff]
    %v2488 = vld [vmem:[%s5 + $0x1d8] sm:$0xff]
    %v2489 = vld [vmem:[%s5 + $0x1e0] sm:$0xff]
    %v2490 = vld [vmem:[%s5 + $0x1e8] sm:$0xff]
    %v2491 = vld [vmem:[%s5 + $0x1f0] sm:$0xff]
    %v2492 = vld [vmem:[%s5 + $0x1f8] sm:$0xff]
    %v2493 = vld [vmem:[%s6] sm:$0x3]
    %v2495 = vlaneseq
    %v2496 = vshrl.u32 %v2495, 7
    %v2497 = vsub.s32 0, %v2496
    %v2498 = vrot.slane %v2493, %v2497
    %v2499 = vlaneseq
    %v2500 = vshrl.u32 %v2499, 7
    %v2501 = vsub.s32 1, %v2500
    %v2502 = vrot.slane %v2493, %v2501
    %v2569 = vunpack.c.l.b16 %v2429
    %v2570 = vunpack.c.h.b16 %v2429
    %v2571 = vunpack.c.l.b16 %v2430
    %v2572 = vunpack.c.h.b16 %v2430
    %v2573 = vunpack.c.l.b16 %v2431
    %v2574 = vunpack.c.h.b16 %v2431
    %v2575 = vunpack.c.l.b16 %v2432
    %v2576 = vunpack.c.h.b16 %v2432
    %v2577 = vunpack.c.l.b16 %v2433
    %v2578 = vunpack.c.h.b16 %v2433
    %v2579 = vunpack.c.l.b16 %v2434
    %v2580 = vunpack.c.h.b16 %v2434
    %v2581 = vunpack.c.l.b16 %v2435
    %v2582 = vunpack.c.h.b16 %v2435
    %v2583 = vunpack.c.l.b16 %v2436
    %v2584 = vunpack.c.h.b16 %v2436
    %v2585 = vunpack.c.l.b16 %v2437
    %v2586 = vunpack.c.h.b16 %v2437
    %v2587 = vunpack.c.l.b16 %v2438
    %v2588 = vunpack.c.h.b16 %v2438
    %v2589 = vunpack.c.l.b16 %v2439
    %v2590 = vunpack.c.h.b16 %v2439
    %v2591 = vunpack.c.l.b16 %v2440
    %v2592 = vunpack.c.h.b16 %v2440
    %v2593 = vunpack.c.l.b16 %v2441
    %v2594 = vunpack.c.h.b16 %v2441
    %v2595 = vunpack.c.l.b16 %v2442
    %v2596 = vunpack.c.h.b16 %v2442
    %v2597 = vunpack.c.l.b16 %v2443
    %v2598 = vunpack.c.h.b16 %v2443
    %v2599 = vunpack.c.l.b16 %v2444
    %v2600 = vunpack.c.h.b16 %v2444
    %v2601 = vunpack.c.l.b16 %v2445
    %v2602 = vunpack.c.h.b16 %v2445
    %v2603 = vunpack.c.l.b16 %v2446
    %v2604 = vunpack.c.h.b16 %v2446
    %v2605 = vunpack.c.l.b16 %v2447
    %v2606 = vunpack.c.h.b16 %v2447
    %v2607 = vunpack.c.l.b16 %v2448
    %v2608 = vunpack.c.h.b16 %v2448
    %v2609 = vunpack.c.l.b16 %v2449
    %v2610 = vunpack.c.h.b16 %v2449
    %v2611 = vunpack.c.l.b16 %v2450
    %v2612 = vunpack.c.h.b16 %v2450
    %v2613 = vunpack.c.l.b16 %v2451
    %v2614 = vunpack.c.h.b16 %v2451
    %v2615 = vunpack.c.l.b16 %v2452
    %v2616 = vunpack.c.h.b16 %v2452
    %v2617 = vunpack.c.l.b16 %v2453
    %v2618 = vunpack.c.h.b16 %v2453
    %v2619 = vunpack.c.l.b16 %v2454
    %v2620 = vunpack.c.h.b16 %v2454
    %v2621 = vunpack.c.l.b16 %v2455
    %v2622 = vunpack.c.h.b16 %v2455
    %v2623 = vunpack.c.l.b16 %v2456
    %v2624 = vunpack.c.h.b16 %v2456
    %v2625 = vunpack.c.l.b16 %v2457
    %v2626 = vunpack.c.h.b16 %v2457
    %v2627 = vunpack.c.l.b16 %v2458
    %v2628 = vunpack.c.h.b16 %v2458
    %v2629 = vunpack.c.l.b16 %v2459
    %v2630 = vunpack.c.h.b16 %v2459
    %v2631 = vunpack.c.l.b16 %v2460
    %v2632 = vunpack.c.h.b16 %v2460
    %v2633 = vunpack.c.l.b16 %v2461
    %v2634 = vunpack.c.h.b16 %v2461
    %v2635 = vunpack.c.l.b16 %v2462
    %v2636 = vunpack.c.h.b16 %v2462
    %v2637 = vunpack.c.l.b16 %v2463
    %v2638 = vunpack.c.h.b16 %v2463
    %v2639 = vunpack.c.l.b16 %v2464
    %v2640 = vunpack.c.h.b16 %v2464
    %v2641 = vunpack.c.l.b16 %v2465
    %v2642 = vunpack.c.h.b16 %v2465
    %v2643 = vunpack.c.l.b16 %v2466
    %v2644 = vunpack.c.h.b16 %v2466
    %v2645 = vunpack.c.l.b16 %v2467
    %v2646 = vunpack.c.h.b16 %v2467
    %v2647 = vunpack.c.l.b16 %v2468
    %v2648 = vunpack.c.h.b16 %v2468
    %v2649 = vunpack.c.l.b16 %v2469
    %v2650 = vunpack.c.h.b16 %v2469
    %v2651 = vunpack.c.l.b16 %v2470
    %v2652 = vunpack.c.h.b16 %v2470
    %v2653 = vunpack.c.l.b16 %v2471
    %v2654 = vunpack.c.h.b16 %v2471
    %v2655 = vunpack.c.l.b16 %v2472
    %v2656 = vunpack.c.h.b16 %v2472
    %v2657 = vunpack.c.l.b16 %v2473
    %v2658 = vunpack.c.h.b16 %v2473
    %v2659 = vunpack.c.l.b16 %v2474
    %v2660 = vunpack.c.h.b16 %v2474
    %v2661 = vunpack.c.l.b16 %v2475
    %v2662 = vunpack.c.h.b16 %v2475
    %v2663 = vunpack.c.l.b16 %v2476
    %v2664 = vunpack.c.h.b16 %v2476
    %v2665 = vunpack.c.l.b16 %v2477
    %v2666 = vunpack.c.h.b16 %v2477
    %v2667 = vunpack.c.l.b16 %v2478
    %v2668 = vunpack.c.h.b16 %v2478
    %v2669 = vunpack.c.l.b16 %v2479
    %v2670 = vunpack.c.h.b16 %v2479
    %v2671 = vunpack.c.l.b16 %v2480
    %v2672 = vunpack.c.h.b16 %v2480
    %v2673 = vunpack.c.l.b16 %v2481
    %v2674 = vunpack.c.h.b16 %v2481
    %v2675 = vunpack.c.l.b16 %v2482
    %v2676 = vunpack.c.h.b16 %v2482
    %v2677 = vunpack.c.l.b16 %v2483
    %v2678 = vunpack.c.h.b16 %v2483
    %v2679 = vunpack.c.l.b16 %v2484
    %v2680 = vunpack.c.h.b16 %v2484
    %v2681 = vunpack.c.l.b16 %v2485
    %v2682 = vunpack.c.h.b16 %v2485
    %v2683 = vunpack.c.l.b16 %v2486
    %v2684 = vunpack.c.h.b16 %v2486
    %v2685 = vunpack.c.l.b16 %v2487
    %v2686 = vunpack.c.h.b16 %v2487
    %v2687 = vunpack.c.l.b16 %v2488
    %v2688 = vunpack.c.h.b16 %v2488
    %v2689 = vunpack.c.l.b16 %v2489
    %v2690 = vunpack.c.h.b16 %v2489
    %v2691 = vunpack.c.l.b16 %v2490
    %v2692 = vunpack.c.h.b16 %v2490
    %v2693 = vunpack.c.l.b16 %v2491
    %v2694 = vunpack.c.h.b16 %v2491
    %v2695 = vunpack.c.l.b16 %v2492
    %v2696 = vunpack.c.h.b16 %v2492
    %v2697 = vpack.c.b16 %v2571, %v2569
    %v2698 = vpack.c.b16 %v2572, %v2570
    %v2699 = vpack.c.b16 %v2575, %v2573
    %v2700 = vpack.c.b16 %v2576, %v2574
    %v2701 = vpack.c.b16 %v2579, %v2577
    %v2702 = vpack.c.b16 %v2580, %v2578
    %v2703 = vpack.c.b16 %v2583, %v2581
    %v2704 = vpack.c.b16 %v2584, %v2582
    %v2705 = vpack.c.b16 %v2587, %v2585
    %v2706 = vpack.c.b16 %v2588, %v2586
    %v2707 = vpack.c.b16 %v2591, %v2589
    %v2708 = vpack.c.b16 %v2592, %v2590
    %v2709 = vpack.c.b16 %v2595, %v2593
    %v2710 = vpack.c.b16 %v2596, %v2594
    %v2711 = vpack.c.b16 %v2599, %v2597
    %v2712 = vpack.c.b16 %v2600, %v2598
    %v2713 = vpack.c.b16 %v2603, %v2601
    %v2714 = vpack.c.b16 %v2604, %v2602
    %v2715 = vpack.c.b16 %v2607, %v2605
    %v2716 = vpack.c.b16 %v2608, %v2606
    %v2717 = vpack.c.b16 %v2611, %v2609
    %v2718 = vpack.c.b16 %v2612, %v2610
    %v2719 = vpack.c.b16 %v2615, %v2613
    %v2720 = vpack.c.b16 %v2616, %v2614
    %v2721 = vpack.c.b16 %v2619, %v2617
    %v2722 = vpack.c.b16 %v2620, %v2618
    %v2723 = vpack.c.b16 %v2623, %v2621
    %v2724 = vpack.c.b16 %v2624, %v2622
    %v2725 = vpack.c.b16 %v2627, %v2625
    %v2726 = vpack.c.b16 %v2628, %v2626
    %v2727 = vpack.c.b16 %v2631, %v2629
    %v2728 = vpack.c.b16 %v2632, %v2630
    %v2729 = vpack.c.b16 %v2635, %v2633
    %v2730 = vpack.c.b16 %v2636, %v2634
    %v2731 = vpack.c.b16 %v2639, %v2637
    %v2732 = vpack.c.b16 %v2640, %v2638
    %v2733 = vpack.c.b16 %v2643, %v2641
    %v2734 = vpack.c.b16 %v2644, %v2642
    %v2735 = vpack.c.b16 %v2647, %v2645
    %v2736 = vpack.c.b16 %v2648, %v2646
    %v2737 = vpack.c.b16 %v2651, %v2649
    %v2738 = vpack.c.b16 %v2652, %v2650
    %v2739 = vpack.c.b16 %v2655, %v2653
    %v2740 = vpack.c.b16 %v2656, %v2654
    %v2741 = vpack.c.b16 %v2659, %v2657
    %v2742 = vpack.c.b16 %v2660, %v2658
    %v2743 = vpack.c.b16 %v2663, %v2661
    %v2744 = vpack.c.b16 %v2664, %v2662
    %v2745 = vpack.c.b16 %v2667, %v2665
    %v2746 = vpack.c.b16 %v2668, %v2666
    %v2747 = vpack.c.b16 %v2671, %v2669
    %v2748 = vpack.c.b16 %v2672, %v2670
    %v2749 = vpack.c.b16 %v2675, %v2673
    %v2750 = vpack.c.b16 %v2676, %v2674
    %v2751 = vpack.c.b16 %v2679, %v2677
    %v2752 = vpack.c.b16 %v2680, %v2678
    %v2753 = vpack.c.b16 %v2683, %v2681
    %v2754 = vpack.c.b16 %v2684, %v2682
    %v2755 = vpack.c.b16 %v2687, %v2685
    %v2756 = vpack.c.b16 %v2688, %v2686
    %v2757 = vpack.c.b16 %v2691, %v2689
    %v2758 = vpack.c.b16 %v2692, %v2690
    %v2759 = vpack.c.b16 %v2695, %v2693
    %v2760 = vpack.c.b16 %v2696, %v2694
    %2825 = vmatprep.subr.bf16.mxu0 %v2712
    %2826 = vmatpush1.bf16.msra.mxu0 %v2711
    %2827 = vmatprep.subr.bf16.mxu0 %v2710
    %2828 = vmatpush1.bf16.msra.mxu0 %v2709
    %2829 = vmatprep.subr.bf16.mxu0 %v2708
    %2830 = vmatpush1.bf16.msra.mxu0 %v2707
    %2831 = vmatprep.subr.bf16.mxu0 %v2706
    %2832 = vmatpush1.bf16.msra.mxu0 %v2705
    %2833 = vmatprep.subr.bf16.mxu0 %v2704
    %2834 = vmatpush1.bf16.msra.mxu0 %v2703
    %2835 = vmatprep.subr.bf16.mxu0 %v2702
    %2836 = vmatpush1.bf16.msra.mxu0 %v2701
    %2837 = vmatprep.subr.bf16.mxu0 %v2700
    %2838 = vmatpush1.bf16.msra.mxu0 %v2699
    %2839 = vmatprep.subr.bf16.mxu0 %v2698
    %2840 = vmatpush1.bf16.msra.mxu0 %v2697
    %2841 = vmatprep.subr.bf16.mxu0 %v2728
    %2842 = vmatpush2.bf16.msra.mxu0 %v2727
    %2843 = vmatprep.subr.bf16.mxu0 %v2726
    %2844 = vmatpush2.bf16.msra.mxu0 %v2725
    %2845 = vmatprep.subr.bf16.mxu0 %v2724
    %2846 = vmatpush2.bf16.msra.mxu0 %v2723
    %2847 = vmatprep.subr.bf16.mxu0 %v2722
    %2848 = vmatpush2.bf16.msra.mxu0 %v2721
    %2849 = vmatprep.subr.bf16.mxu0 %v2720
    %2850 = vmatpush2.bf16.msra.mxu0 %v2719
    %2851 = vmatprep.subr.bf16.mxu0 %v2718
    %2852 = vmatpush2.bf16.msra.mxu0 %v2717
    %2853 = vmatprep.subr.bf16.mxu0 %v2716
    %2854 = vmatpush2.bf16.msra.mxu0 %v2715
    %2855 = vmatprep.subr.bf16.mxu0 %v2714
    %2856 = vmatpush2.bf16.msra.mxu0 %v2713
    %2857 = vmatprep.mubr.bf16.mxu0 %v2426
    %2858 = vmatmul.mubr.bf16.gmra.mxu0 %v2425
    %v2859 = vpop.f32.mrf.mxu0
    %v2860 = vadd.f32 %v2498, %v2859
    %v2861 = vpop.f32.mrf.mxu0
    %v2862 = vadd.f32 %v2502, %v2861
    %v2863 = vpop.f32.mrf.mxu0
    %v2864 = vpop.f32.mrf.mxu0
    %2865 = vdwg.mxu0
    %2866 = vmatprep.subr.bf16.mxu0 %v2744
    %2867 = vmatpush1.bf16.msra.mxu0 %v2743
    %2868 = vmatprep.subr.bf16.mxu0 %v2742
    %2869 = vmatpush1.bf16.msra.mxu0 %v2741
    %2870 = vmatprep.subr.bf16.mxu0 %v2740
    %2871 = vmatpush1.bf16.msra.mxu0 %v2739
    %2872 = vmatprep.subr.bf16.mxu0 %v2738
    %2873 = vmatpush1.bf16.msra.mxu0 %v2737
    %2874 = vmatprep.subr.bf16.mxu0 %v2736
    %2875 = vmatpush1.bf16.msra.mxu0 %v2735
    %2876 = vmatprep.subr.bf16.mxu0 %v2734
    %2877 = vmatpush1.bf16.msra.mxu0 %v2733
    %2878 = vmatprep.subr.bf16.mxu0 %v2732
    %2879 = vmatpush1.bf16.msra.mxu0 %v2731
    %2880 = vmatprep.subr.bf16.mxu0 %v2730
    %2881 = vmatpush1.bf16.msra.mxu0 %v2729
    %2882 = vmatprep.subr.bf16.mxu0 %v2760
    %2883 = vmatpush2.bf16.msra.mxu0 %v2759
    %2884 = vmatprep.subr.bf16.mxu0 %v2758
    %2885 = vmatpush2.bf16.msra.mxu0 %v2757
    %2886 = vmatprep.subr.bf16.mxu0 %v2756
    %2887 = vmatpush2.bf16.msra.mxu0 %v2755
    %2888 = vmatprep.subr.bf16.mxu0 %v2754
    %2889 = vmatpush2.bf16.msra.mxu0 %v2753
    %2890 = vmatprep.subr.bf16.mxu0 %v2752
    %2891 = vmatpush2.bf16.msra.mxu0 %v2751
    %2892 = vmatprep.subr.bf16.mxu0 %v2750
    %2893 = vmatpush2.bf16.msra.mxu0 %v2749
    %2894 = vmatprep.subr.bf16.mxu0 %v2748
    %2895 = vmatpush2.bf16.msra.mxu0 %v2747
    %2896 = vmatprep.subr.bf16.mxu0 %v2746
    %2897 = vmatpush2.bf16.msra.mxu0 %v2745
    %2898 = vmatprep.mubr.bf16.mxu0 %v2428
    %2899 = vmatmul.mubr.bf16.gmra.mxu0 %v2427
    %v2900 = vpop.f32.mrf.mxu0
    %v2901 = vadd.f32 %v2860, %v2900
    %v2902 = vpop.f32.mrf.mxu0
    %v2903 = vadd.f32 %v2862, %v2902
    %v2904 = vpop.f32.mrf.mxu0
    %v2905 = vpop.f32.mrf.mxu0
    %2906 = vdwg.mxu0
    %v2907 = vmax.f32 %v2901, 0.0
    %v2908 = vmax.f32 %v2903, 0.0
    %2909 = vst [vmem:[#allocation2] sm:$0xff] %v2907
    %2910 = vst [vmem:[#allocation2 + $0x8] sm:$0xff] %v2908
    // Predicated region
    $region30: #{discourse_base_forward.1} parent=1 // pred_check
      _
    $region31: #{discourse_base_forward.1} parent=1 // pred_check_branch
      %2912 = sbr.rel (0) target = $region33
    $region32: #{discourse_base_forward.1} parent=1 // pred_region
      %s2914 = ssub.s32 256, 256
      %2915 = vsyncadd [#allocation3], %s2914
      %s2917 = sshll.u32 [#allocation2], 4
      %s2918 = int_to_ptr.vmem [resolvable:$true] %s2917
      %2920 = dma.vmem_to_hbm [thread:$0]  %s2918, 256, %s7, [#allocation3]
    $region33: #{discourse_base_forward.1} parent=1 // pred_fallthru
      _
    // Predicated region
    $region34: #{discourse_base_forward.1} parent=1 // pred_check
      _
    $region35: #{discourse_base_forward.1} parent=1 // pred_check_branch
      %2922 = sbr.rel (0) target = $region37
    $region36: #{discourse_base_forward.1} parent=1 // pred_region
      %2923 = dma.done [#allocation3], 256
    $region37: #{discourse_base_forward.1} parent=1 // pred_fallthru
      _
    %2924 = vsyncpa [#allocation3], 1

</llo_original>
